<compile_context>
chip_gen: v7x
topology: tpu7x:2x2x1
jax: 0.10.0
libtpu: 0.0.40
codegen_flags: <defaults>
</compile_context>

<pallas_src>
import functools
import math

import jax
import jax.numpy as jnp
from jax.experimental import pallas as pl
from jax.experimental.pallas import tpu as pltpu


def attn_prop_kernel(x_ref, src_ref,
                     wq_ref, bq_ref, wk_ref, bk_ref, wv_ref, bv_ref,
                     wm_ref, bm_ref, w1a_ref, w1b_ref, b1_ref, w2_ref, b2_ref,
                     o_ref, attn_scratch, *, num_heads, head_dim):
    x = x_ref[0]      # (F, N) bf16
    src = src_ref[0]  # (F, M) bf16

    # --- 1x1-conv projections: bf16 operands, f32 accumulation ---
    # (1/sqrt(head_dim) already folded into Wq/bq by the wrapper.)
    q = jnp.dot(wq_ref[...], x, preferred_element_type=jnp.float32) + bq_ref[...]
    k = jnp.dot(wk_ref[...], src, preferred_element_type=jnp.float32) + bk_ref[...]
    v = jnp.dot(wv_ref[...], src, preferred_element_type=jnp.float32) + bv_ref[...]

    # --- multi-head scaled dot-product attention (unrolled; num_heads static) ---
    for h in range(num_heads):
        lo = h * head_dim
        # f32 sublane slices at head_dim (multiple of 8) boundaries: tile-aligned.
        qh = q[lo:lo + head_dim, :].astype(jnp.bfloat16)   # (D, N)
        kh = k[lo:lo + head_dim, :].astype(jnp.bfloat16)   # (D, M)
        vh = v[lo:lo + head_dim, :].astype(jnp.bfloat16)   # (D, M)
        # scores[n, m] = sum_d qh[d, n] * kh[d, m]   (f32 accumulation)
        scores = jax.lax.dot_general(
            qh, kh, (((0,), (0,)), ((), ())),
            preferred_element_type=jnp.float32)            # (N, M) f32
        # softmax statistics in f32
        smax = jnp.max(scores, axis=-1, keepdims=True)
        p = jnp.exp(scores - smax)
        # deferred-normalization softmax: EUP reciprocal + one VPU multiply
        # (fused with the bf16 cast) instead of an (N, M) VALU divide.
        inv = pl.reciprocal(jnp.sum(p, axis=-1, keepdims=True), approx=True)
        prob = (p * inv).astype(jnp.bfloat16)              # (N, M) bf16
        # out[d, n] = sum_m vh[d, m] * prob[n, m]
        rh = jax.lax.dot_general(
            vh, prob, (((1,), (1,)), ((), ())),
            preferred_element_type=jnp.float32)            # (D, N) f32
        attn_scratch[lo:lo + head_dim, :] = rh             # head-major rows

    # merge conv; weight columns are pre-permuted to head-major order in the
    # wrapper, so this is a single full-F (K=F) contraction.
    attn_bf = attn_scratch[...].astype(jnp.bfloat16)       # (F, N)
    message = (jnp.dot(wm_ref[...], attn_bf, preferred_element_type=jnp.float32)
               + bm_ref[...])                              # (F, N) f32

    # --- MLP: conv1x1(2F->2F) -> InstanceNorm1d -> ReLU -> conv1x1(2F->F) ---
    # concat([x, message]) folded into two matmuls on the pre-split W1 halves.
    y1 = (jnp.dot(w1a_ref[...], x, preferred_element_type=jnp.float32)
          + jnp.dot(w1b_ref[...], message.astype(jnp.bfloat16),
                    preferred_element_type=jnp.float32)
          + b1_ref[...])                                   # (2F, N) f32
    # single-pass InstanceNorm stats in f32 (biased variance, eps=1e-5)
    mean = jnp.mean(y1, axis=-1, keepdims=True)
    mean_sq = jnp.mean(y1 * y1, axis=-1, keepdims=True)
    var = jnp.maximum(mean_sq - mean * mean, 0.0)
    y1 = (y1 - mean) * jax.lax.rsqrt(var + 1e-5)
    y1 = jnp.maximum(y1, 0.0)                              # ReLU
    out = (jnp.dot(w2_ref[...], y1.astype(jnp.bfloat16),
                   preferred_element_type=jnp.float32)
           + b2_ref[...])                                  # (F, N) f32
    o_ref[0] = out.astype(o_ref.dtype)


def attentional_propagation(x, source, params, *, num_heads):
    B, feat, N = x.shape
    M = source.shape[2]
    assert feat % num_heads == 0
    head_dim = feat // num_heads
    # f32 sublane tile is 8: per-head slices of q/k/v and of the attention
    # scratch must be tile-aligned to avoid relayout copies.
    assert head_dim % 8 == 0, "head_dim must be a multiple of 8"

    # Permutation mapping "head-major" channel i = h*D + d -> original c = d*H + h.
    perm = jnp.asarray(
        [d * num_heads + h for h in range(num_heads) for d in range(head_dim)],
        dtype=jnp.int32)

    inv_scale = 1.0 / math.sqrt(head_dim)
    bf16 = jnp.bfloat16
    f32 = jnp.float32

    # Weights -> bf16 (matmul operands); biases stay f32 (added to f32 accum).
    wq = (params["wq"][perm, :] * inv_scale).astype(bf16)
    bq = (params["bq"][perm] * inv_scale).reshape(feat, 1).astype(f32)
    wk = params["wk"][perm, :].astype(bf16)
    bk = params["bk"][perm].reshape(feat, 1).astype(f32)
    wv = params["wv"][perm, :].astype(bf16)
    bv = params["bv"][perm].reshape(feat, 1).astype(f32)
    wm = params["wm"][:, perm].astype(bf16)
    bm = params["bm"].reshape(feat, 1).astype(f32)
    w1a = params["w1"][:, :feat].astype(bf16)   # acts on x
    w1b = params["w1"][:, feat:].astype(bf16)   # acts on message
    b1 = params["b1"].reshape(2 * feat, 1).astype(f32)
    w2 = params["w2"].astype(bf16)
    b2 = params["b2"].reshape(feat, 1).astype(f32)

    # Activations -> bf16 (halves input DMA; they only feed bf16 matmuls).
    x_bf = x.astype(bf16)
    src_bf = source.astype(bf16)

    kernel = functools.partial(attn_prop_kernel,
                               num_heads=num_heads, head_dim=head_dim)

    def const_spec(shape):
        zeros = (0,) * len(shape)
        return pl.BlockSpec(shape, lambda b, _z=zeros: _z)

    grid_spec = pltpu.PrefetchScalarGridSpec(
        num_scalar_prefetch=0,
        grid=(B,),
        in_specs=[
            pl.BlockSpec((1, feat, N), lambda b: (b, 0, 0)),       # x (bf16)
            pl.BlockSpec((1, feat, M), lambda b: (b, 0, 0)),       # source (bf16)
            const_spec((feat, feat)), const_spec((feat, 1)),       # Wq (scaled), bq
            const_spec((feat, feat)), const_spec((feat, 1)),       # Wk, bk
            const_spec((feat, feat)), const_spec((feat, 1)),       # Wv, bv
            const_spec((feat, feat)), const_spec((feat, 1)),       # Wmerge, bmerge
            const_spec((2 * feat, feat)),                          # W1[:, :F]
            const_spec((2 * feat, feat)),                          # W1[:, F:]
            const_spec((2 * feat, 1)),                             # b1
            const_spec((feat, 2 * feat)), const_spec((feat, 1)),   # W2, b2
        ],
        out_specs=pl.BlockSpec((1, feat, N), lambda b: (b, 0, 0)),
        scratch_shapes=[pltpu.VMEM((feat, N), jnp.float32)],       # head-major attn out
    )

    return pl.pallas_call(
        kernel,
        out_shape=jax.ShapeDtypeStruct((B, feat, N), x.dtype),
        grid_spec=grid_spec,
        compiler_params=pltpu.CompilerParams(
            dimension_semantics=("parallel",),        # batch elems independent (v7x 2 TCs)
            vmem_limit_bytes=48 * 1024 * 1024),       # > scoped default on v5e/v6e/v7x
    )(x_bf, src_bf, wq, bq, wk, bk, wv, bv, wm, bm, w1a, w1b, b1, w2, b2)


def reference_forward(x, source, params, *, num_heads):
    """Pure-JAX (f32) replica of the PyTorch forward, for validation."""
    B, feat, N = x.shape
    head_dim = feat // num_heads

    def conv1x1(w, b, t):
        return jnp.einsum("oi,bil->bol", w, t) + b[None, :, None]

    q = conv1x1(params["wq"], params["bq"], x)
    k = conv1x1(params["wk"], params["bk"], source)
    v = conv1x1(params["wv"], params["bv"], source)
    q = q.reshape(B, head_dim, num_heads, -1)
    k = k.reshape(B, head_dim, num_heads, -1)
    v = v.reshape(B, head_dim, num_heads, -1)
    scores = jnp.einsum("bdhn,bdhm->bhnm", q, k) / head_dim ** 0.5
    prob = jax.nn.softmax(scores, axis=-1)
    res = jnp.einsum("bhnm,bdhm->bdhn", prob, v).reshape(B, feat, -1)
    message = conv1x1(params["wm"], params["bm"], res)
    cat = jnp.concatenate([x, message], axis=1)
    y1 = conv1x1(params["w1"], params["b1"], cat)
    mean = y1.mean(-1, keepdims=True)
    var = ((y1 - mean) ** 2).mean(-1, keepdims=True)
    y1 = jnp.maximum((y1 - mean) / jnp.sqrt(var + 1e-5), 0.0)
    return conv1x1(params["w2"], params["b2"], y1)


def init_params(key, feat):
    ks = jax.random.split(key, 12)
    scale = 0.1
    params = {
        "wq": scale * jax.random.normal(ks[0], (feat, feat), jnp.float32),
        "bq": scale * jax.random.normal(ks[1], (feat,), jnp.float32),
        "wk": scale * jax.random.normal(ks[2], (feat, feat), jnp.float32),
        "bk": scale * jax.random.normal(ks[3], (feat,), jnp.float32),
        "wv": scale * jax.random.normal(ks[4], (feat, feat), jnp.float32),
        "bv": scale * jax.random.normal(ks[5], (feat,), jnp.float32),
        "wm": scale * jax.random.normal(ks[6], (feat, feat), jnp.float32),
        "bm": scale * jax.random.normal(ks[7], (feat,), jnp.float32),
        "w1": scale * jax.random.normal(ks[8], (2 * feat, 2 * feat), jnp.float32),
        "b1": scale * jax.random.normal(ks[9], (2 * feat,), jnp.float32),
        "w2": scale * jax.random.normal(ks[10], (feat, 2 * feat), jnp.float32),
        # nn.init.constant_(self.mlp[-1].bias, 0.0)
        "b2": jnp.zeros((feat,), jnp.float32),
    }
    return params


if __name__ == "__main__":
    B, FEAT, NUM_HEADS, N, M = 2, 32, 4, 16, 24

    key = jax.random.PRNGKey(0)
    kx, ksrc, kp = jax.random.split(key, 3)
    x = jax.random.normal(kx, (B, FEAT, N), jnp.float32)
    source = jax.random.normal(ksrc, (B, FEAT, M), jnp.float32)
    params = init_params(kp, FEAT)

    out = attentional_propagation(x, source, params, num_heads=NUM_HEADS)
    out = jax.block_until_ready(out)

    ref = jax.block_until_ready(
        reference_forward(x, source, params, num_heads=NUM_HEADS))
    assert out.shape == (B, FEAT, N)
    max_err = float(jnp.max(jnp.abs(out - ref)))
    # bf16 matmul operands with f32 accumulation -> relaxed tolerance vs f32 ref.
    assert jnp.allclose(out, ref, atol=5e-2, rtol=5e-2), max_err

    print("KERNEL_OK")
</pallas_src>

<mosaic_0001>
module attributes {stable_mosaic.version = 11 : i64} {
  func.func @attn_prop_kernel(%arg0: i32, %arg1: memref<1x32x16xbf16, #tpu.memory_space<vmem>>, %arg2: memref<1x32x24xbf16, #tpu.memory_space<vmem>>, %arg3: memref<32x32xbf16, #tpu.memory_space<vmem>>, %arg4: memref<32x1xf32, #tpu.memory_space<vmem>>, %arg5: memref<32x32xbf16, #tpu.memory_space<vmem>>, %arg6: memref<32x1xf32, #tpu.memory_space<vmem>>, %arg7: memref<32x32xbf16, #tpu.memory_space<vmem>>, %arg8: memref<32x1xf32, #tpu.memory_space<vmem>>, %arg9: memref<32x32xbf16, #tpu.memory_space<vmem>>, %arg10: memref<32x1xf32, #tpu.memory_space<vmem>>, %arg11: memref<64x32xbf16, #tpu.memory_space<vmem>>, %arg12: memref<64x32xbf16, #tpu.memory_space<vmem>>, %arg13: memref<64x1xf32, #tpu.memory_space<vmem>>, %arg14: memref<32x64xbf16, #tpu.memory_space<vmem>>, %arg15: memref<32x1xf32, #tpu.memory_space<vmem>>, %arg16: memref<1x32x16xf32, #tpu.memory_space<vmem>>, %arg17: memref<32x16xf32, #tpu.memory_space<vmem>>) attributes {dimension_semantics = [#tpu.dimension_semantics<parallel>], iteration_bounds = array<i64: 2>, scalar_prefetch = 0 : i64, scratch_operands = 1 : i64, tpu.core_type = #tpu.core_type<tc>, window_params = [{transform_indices = @transform_0, window_bounds = array<i64: 1, 32, 16>}, {transform_indices = @transform_1, window_bounds = array<i64: 1, 32, 24>}, {pipeline_mode = #tpu.pipeline_mode<synchronous>, transform_indices = @transform_2, window_bounds = array<i64: 32, 32>}, {pipeline_mode = #tpu.pipeline_mode<synchronous>, transform_indices = @transform_3, window_bounds = array<i64: 32, 1>}, {pipeline_mode = #tpu.pipeline_mode<synchronous>, transform_indices = @transform_4, window_bounds = array<i64: 32, 32>}, {pipeline_mode = #tpu.pipeline_mode<synchronous>, transform_indices = @transform_5, window_bounds = array<i64: 32, 1>}, {pipeline_mode = #tpu.pipeline_mode<synchronous>, transform_indices = @transform_6, window_bounds = array<i64: 32, 32>}, {pipeline_mode = #tpu.pipeline_mode<synchronous>, transform_indices = @transform_7, window_bounds = array<i64: 32, 1>}, {pipeline_mode = #tpu.pipeline_mode<synchronous>, transform_indices = @transform_8, window_bounds = array<i64: 32, 32>}, {pipeline_mode = #tpu.pipeline_mode<synchronous>, transform_indices = @transform_9, window_bounds = array<i64: 32, 1>}, {pipeline_mode = #tpu.pipeline_mode<synchronous>, transform_indices = @transform_10, window_bounds = array<i64: 64, 32>}, {pipeline_mode = #tpu.pipeline_mode<synchronous>, transform_indices = @transform_11, window_bounds = array<i64: 64, 32>}, {pipeline_mode = #tpu.pipeline_mode<synchronous>, transform_indices = @transform_12, window_bounds = array<i64: 64, 1>}, {pipeline_mode = #tpu.pipeline_mode<synchronous>, transform_indices = @transform_13, window_bounds = array<i64: 32, 64>}, {pipeline_mode = #tpu.pipeline_mode<synchronous>, transform_indices = @transform_14, window_bounds = array<i64: 32, 1>}, {transform_indices = @transform_15, window_bounds = array<i64: 1, 32, 16>}]} {
    %c0 = arith.constant 0 : index
    %c0_0 = arith.constant 0 : index
    %c0_1 = arith.constant 0 : index
    %0 = vector.load %arg1[%c0, %c0_0, %c0_1] : memref<1x32x16xbf16, #tpu.memory_space<vmem>>, vector<1x32x16xbf16>
    %1 = vector.shape_cast %0 : vector<1x32x16xbf16> to vector<32x16xbf16>
    %c0_2 = arith.constant 0 : index
    %c0_3 = arith.constant 0 : index
    %c0_4 = arith.constant 0 : index
    %2 = vector.load %arg2[%c0_2, %c0_3, %c0_4] : memref<1x32x24xbf16, #tpu.memory_space<vmem>>, vector<1x32x24xbf16>
    %3 = vector.shape_cast %2 : vector<1x32x24xbf16> to vector<32x24xbf16>
    %c0_5 = arith.constant 0 : index
    %c0_6 = arith.constant 0 : index
    %4 = vector.load %arg3[%c0_5, %c0_6] : memref<32x32xbf16, #tpu.memory_space<vmem>>, vector<32x32xbf16>
    %cst = arith.constant dense<0.000000e+00> : vector<32x16xf32>
    %5 = tpu.matmul %4, %1, %cst {dimension_numbers = #tpu.dot_dimension_numbers<[1], [0], [0], [1], [0, 0, 1, 1], [], []>} : vector<32x32xbf16>, vector<32x16xbf16>, vector<32x16xf32> -> vector<32x16xf32>
    %c0_7 = arith.constant 0 : index
    %c0_8 = arith.constant 0 : index
    %6 = vector.load %arg4[%c0_7, %c0_8] : memref<32x1xf32, #tpu.memory_space<vmem>>, vector<32x1xf32>
    %7 = vector.broadcast %6 : vector<32x1xf32> to vector<32x16xf32>
    %8 = arith.addf %5, %7 : vector<32x16xf32>
    %c0_9 = arith.constant 0 : index
    %c0_10 = arith.constant 0 : index
    %9 = vector.load %arg5[%c0_9, %c0_10] : memref<32x32xbf16, #tpu.memory_space<vmem>>, vector<32x32xbf16>
    %cst_11 = arith.constant dense<0.000000e+00> : vector<32x24xf32>
    %10 = tpu.matmul %9, %3, %cst_11 {dimension_numbers = #tpu.dot_dimension_numbers<[1], [0], [0], [1], [0, 0, 1, 1], [], []>} : vector<32x32xbf16>, vector<32x24xbf16>, vector<32x24xf32> -> vector<32x24xf32>
    %c0_12 = arith.constant 0 : index
    %c0_13 = arith.constant 0 : index
    %11 = vector.load %arg6[%c0_12, %c0_13] : memref<32x1xf32, #tpu.memory_space<vmem>>, vector<32x1xf32>
    %12 = vector.broadcast %11 : vector<32x1xf32> to vector<32x24xf32>
    %13 = arith.addf %10, %12 : vector<32x24xf32>
    %c0_14 = arith.constant 0 : index
    %c0_15 = arith.constant 0 : index
    %14 = vector.load %arg7[%c0_14, %c0_15] : memref<32x32xbf16, #tpu.memory_space<vmem>>, vector<32x32xbf16>
    %cst_16 = arith.constant dense<0.000000e+00> : vector<32x24xf32>
    %15 = tpu.matmul %14, %3, %cst_16 {dimension_numbers = #tpu.dot_dimension_numbers<[1], [0], [0], [1], [0, 0, 1, 1], [], []>} : vector<32x32xbf16>, vector<32x24xbf16>, vector<32x24xf32> -> vector<32x24xf32>
    %c0_17 = arith.constant 0 : index
    %c0_18 = arith.constant 0 : index
    %16 = vector.load %arg8[%c0_17, %c0_18] : memref<32x1xf32, #tpu.memory_space<vmem>>, vector<32x1xf32>
    %17 = vector.broadcast %16 : vector<32x1xf32> to vector<32x24xf32>
    %18 = arith.addf %15, %17 : vector<32x24xf32>
    %19 = vector.extract_strided_slice %8 {offsets = [0, 0], sizes = [8, 16], strides = [1, 1]} : vector<32x16xf32> to vector<8x16xf32>
    %20 = arith.truncf %19 : vector<8x16xf32> to vector<8x16xbf16>
    %21 = vector.extract_strided_slice %13 {offsets = [0, 0], sizes = [8, 24], strides = [1, 1]} : vector<32x24xf32> to vector<8x24xf32>
    %22 = arith.truncf %21 : vector<8x24xf32> to vector<8x24xbf16>
    %23 = vector.extract_strided_slice %18 {offsets = [0, 0], sizes = [8, 24], strides = [1, 1]} : vector<32x24xf32> to vector<8x24xf32>
    %24 = arith.truncf %23 : vector<8x24xf32> to vector<8x24xbf16>
    %cst_19 = arith.constant dense<0.000000e+00> : vector<16x24xf32>
    %25 = tpu.matmul %20, %22, %cst_19 {dimension_numbers = #tpu.dot_dimension_numbers<[0], [0], [1], [1], [0, 1, 1, 1], [], []>} : vector<8x16xbf16>, vector<8x24xbf16>, vector<16x24xf32> -> vector<16x24xf32>
    %cst_20 = arith.constant dense<0xFF800000> : vector<16xf32>
    %26 = vector.multi_reduction <maximumf>, %25, %cst_20 [1] : vector<16x24xf32> to vector<16xf32>
    %27 = vector.shape_cast %26 : vector<16xf32> to vector<16x1xf32>
    %28 = vector.broadcast %27 : vector<16x1xf32> to vector<16x24xf32>
    %29 = arith.subf %25, %28 : vector<16x24xf32>
    %30 = math.exp %29 : vector<16x24xf32>
    %cst_21 = arith.constant dense<0.000000e+00> : vector<16xf32>
    %31 = vector.multi_reduction <add>, %30, %cst_21 [1] : vector<16x24xf32> to vector<16xf32>
    %32 = vector.shape_cast %31 : vector<16xf32> to vector<16x1xf32>
    %33 = tpu.reciprocal %32 {approx = true} : vector<16x1xf32> -> vector<16x1xf32>
    %34 = vector.broadcast %33 : vector<16x1xf32> to vector<16x24xf32>
    %35 = arith.mulf %30, %34 : vector<16x24xf32>
    %36 = arith.truncf %35 : vector<16x24xf32> to vector<16x24xbf16>
    %cst_22 = arith.constant dense<0.000000e+00> : vector<8x16xf32>
    %37 = tpu.matmul %24, %36, %cst_22 {dimension_numbers = #tpu.dot_dimension_numbers<[1], [1], [0], [0], [0, 0, 1, 0], [], []>} : vector<8x24xbf16>, vector<16x24xbf16>, vector<8x16xf32> -> vector<8x16xf32>
    %c0_23 = arith.constant 0 : index
    %c0_24 = arith.constant 0 : index
    %38 = vector.load %arg17[%c0_23, %c0_24] : memref<32x16xf32, #tpu.memory_space<vmem>>, vector<8x16xf32>
    tpu.vector_store %arg17[%c0_23, %c0_24], %37 {strides = array<i32>} : memref<32x16xf32, #tpu.memory_space<vmem>>, vector<8x16xf32>,
    %39 = vector.extract_strided_slice %8 {offsets = [8, 0], sizes = [8, 16], strides = [1, 1]} : vector<32x16xf32> to vector<8x16xf32>
    %40 = arith.truncf %39 : vector<8x16xf32> to vector<8x16xbf16>
    %41 = vector.extract_strided_slice %13 {offsets = [8, 0], sizes = [8, 24], strides = [1, 1]} : vector<32x24xf32> to vector<8x24xf32>
    %42 = arith.truncf %41 : vector<8x24xf32> to vector<8x24xbf16>
    %43 = vector.extract_strided_slice %18 {offsets = [8, 0], sizes = [8, 24], strides = [1, 1]} : vector<32x24xf32> to vector<8x24xf32>
    %44 = arith.truncf %43 : vector<8x24xf32> to vector<8x24xbf16>
    %cst_25 = arith.constant dense<0.000000e+00> : vector<16x24xf32>
    %45 = tpu.matmul %40, %42, %cst_25 {dimension_numbers = #tpu.dot_dimension_numbers<[0], [0], [1], [1], [0, 1, 1, 1], [], []>} : vector<8x16xbf16>, vector<8x24xbf16>, vector<16x24xf32> -> vector<16x24xf32>
    %cst_26 = arith.constant dense<0xFF800000> : vector<16xf32>
    %46 = vector.multi_reduction <maximumf>, %45, %cst_26 [1] : vector<16x24xf32> to vector<16xf32>
    %47 = vector.shape_cast %46 : vector<16xf32> to vector<16x1xf32>
    %48 = vector.broadcast %47 : vector<16x1xf32> to vector<16x24xf32>
    %49 = arith.subf %45, %48 : vector<16x24xf32>
    %50 = math.exp %49 : vector<16x24xf32>
    %cst_27 = arith.constant dense<0.000000e+00> : vector<16xf32>
    %51 = vector.multi_reduction <add>, %50, %cst_27 [1] : vector<16x24xf32> to vector<16xf32>
    %52 = vector.shape_cast %51 : vector<16xf32> to vector<16x1xf32>
    %53 = tpu.reciprocal %52 {approx = true} : vector<16x1xf32> -> vector<16x1xf32>
    %54 = vector.broadcast %53 : vector<16x1xf32> to vector<16x24xf32>
    %55 = arith.mulf %50, %54 : vector<16x24xf32>
    %56 = arith.truncf %55 : vector<16x24xf32> to vector<16x24xbf16>
    %cst_28 = arith.constant dense<0.000000e+00> : vector<8x16xf32>
    %57 = tpu.matmul %44, %56, %cst_28 {dimension_numbers = #tpu.dot_dimension_numbers<[1], [1], [0], [0], [0, 0, 1, 0], [], []>} : vector<8x24xbf16>, vector<16x24xbf16>, vector<8x16xf32> -> vector<8x16xf32>
    %c8 = arith.constant 8 : index
    %c0_29 = arith.constant 0 : index
    %58 = vector.load %arg17[%c8, %c0_29] : memref<32x16xf32, #tpu.memory_space<vmem>>, vector<8x16xf32>
    tpu.vector_store %arg17[%c8, %c0_29], %57 {strides = array<i32>} : memref<32x16xf32, #tpu.memory_space<vmem>>, vector<8x16xf32>,
    %59 = vector.extract_strided_slice %8 {offsets = [16, 0], sizes = [8, 16], strides = [1, 1]} : vector<32x16xf32> to vector<8x16xf32>
    %60 = arith.truncf %59 : vector<8x16xf32> to vector<8x16xbf16>
    %61 = vector.extract_strided_slice %13 {offsets = [16, 0], sizes = [8, 24], strides = [1, 1]} : vector<32x24xf32> to vector<8x24xf32>
    %62 = arith.truncf %61 : vector<8x24xf32> to vector<8x24xbf16>
    %63 = vector.extract_strided_slice %18 {offsets = [16, 0], sizes = [8, 24], strides = [1, 1]} : vector<32x24xf32> to vector<8x24xf32>
    %64 = arith.truncf %63 : vector<8x24xf32> to vector<8x24xbf16>
    %cst_30 = arith.constant dense<0.000000e+00> : vector<16x24xf32>
    %65 = tpu.matmul %60, %62, %cst_30 {dimension_numbers = #tpu.dot_dimension_numbers<[0], [0], [1], [1], [0, 1, 1, 1], [], []>} : vector<8x16xbf16>, vector<8x24xbf16>, vector<16x24xf32> -> vector<16x24xf32>
    %cst_31 = arith.constant dense<0xFF800000> : vector<16xf32>
    %66 = vector.multi_reduction <maximumf>, %65, %cst_31 [1] : vector<16x24xf32> to vector<16xf32>
    %67 = vector.shape_cast %66 : vector<16xf32> to vector<16x1xf32>
    %68 = vector.broadcast %67 : vector<16x1xf32> to vector<16x24xf32>
    %69 = arith.subf %65, %68 : vector<16x24xf32>
    %70 = math.exp %69 : vector<16x24xf32>
    %cst_32 = arith.constant dense<0.000000e+00> : vector<16xf32>
    %71 = vector.multi_reduction <add>, %70, %cst_32 [1] : vector<16x24xf32> to vector<16xf32>
    %72 = vector.shape_cast %71 : vector<16xf32> to vector<16x1xf32>
    %73 = tpu.reciprocal %72 {approx = true} : vector<16x1xf32> -> vector<16x1xf32>
    %74 = vector.broadcast %73 : vector<16x1xf32> to vector<16x24xf32>
    %75 = arith.mulf %70, %74 : vector<16x24xf32>
    %76 = arith.truncf %75 : vector<16x24xf32> to vector<16x24xbf16>
    %cst_33 = arith.constant dense<0.000000e+00> : vector<8x16xf32>
    %77 = tpu.matmul %64, %76, %cst_33 {dimension_numbers = #tpu.dot_dimension_numbers<[1], [1], [0], [0], [0, 0, 1, 0], [], []>} : vector<8x24xbf16>, vector<16x24xbf16>, vector<8x16xf32> -> vector<8x16xf32>
    %c16 = arith.constant 16 : index
    %c0_34 = arith.constant 0 : index
    %78 = vector.load %arg17[%c16, %c0_34] : memref<32x16xf32, #tpu.memory_space<vmem>>, vector<8x16xf32>
    tpu.vector_store %arg17[%c16, %c0_34], %77 {strides = array<i32>} : memref<32x16xf32, #tpu.memory_space<vmem>>, vector<8x16xf32>,
    %79 = vector.extract_strided_slice %8 {offsets = [24, 0], sizes = [8, 16], strides = [1, 1]} : vector<32x16xf32> to vector<8x16xf32>
    %80 = arith.truncf %79 : vector<8x16xf32> to vector<8x16xbf16>
    %81 = vector.extract_strided_slice %13 {offsets = [24, 0], sizes = [8, 24], strides = [1, 1]} : vector<32x24xf32> to vector<8x24xf32>
    %82 = arith.truncf %81 : vector<8x24xf32> to vector<8x24xbf16>
    %83 = vector.extract_strided_slice %18 {offsets = [24, 0], sizes = [8, 24], strides = [1, 1]} : vector<32x24xf32> to vector<8x24xf32>
    %84 = arith.truncf %83 : vector<8x24xf32> to vector<8x24xbf16>
    %cst_35 = arith.constant dense<0.000000e+00> : vector<16x24xf32>
    %85 = tpu.matmul %80, %82, %cst_35 {dimension_numbers = #tpu.dot_dimension_numbers<[0], [0], [1], [1], [0, 1, 1, 1], [], []>} : vector<8x16xbf16>, vector<8x24xbf16>, vector<16x24xf32> -> vector<16x24xf32>
    %cst_36 = arith.constant dense<0xFF800000> : vector<16xf32>
    %86 = vector.multi_reduction <maximumf>, %85, %cst_36 [1] : vector<16x24xf32> to vector<16xf32>
    %87 = vector.shape_cast %86 : vector<16xf32> to vector<16x1xf32>
    %88 = vector.broadcast %87 : vector<16x1xf32> to vector<16x24xf32>
    %89 = arith.subf %85, %88 : vector<16x24xf32>
    %90 = math.exp %89 : vector<16x24xf32>
    %cst_37 = arith.constant dense<0.000000e+00> : vector<16xf32>
    %91 = vector.multi_reduction <add>, %90, %cst_37 [1] : vector<16x24xf32> to vector<16xf32>
    %92 = vector.shape_cast %91 : vector<16xf32> to vector<16x1xf32>
    %93 = tpu.reciprocal %92 {approx = true} : vector<16x1xf32> -> vector<16x1xf32>
    %94 = vector.broadcast %93 : vector<16x1xf32> to vector<16x24xf32>
    %95 = arith.mulf %90, %94 : vector<16x24xf32>
    %96 = arith.truncf %95 : vector<16x24xf32> to vector<16x24xbf16>
    %cst_38 = arith.constant dense<0.000000e+00> : vector<8x16xf32>
    %97 = tpu.matmul %84, %96, %cst_38 {dimension_numbers = #tpu.dot_dimension_numbers<[1], [1], [0], [0], [0, 0, 1, 0], [], []>} : vector<8x24xbf16>, vector<16x24xbf16>, vector<8x16xf32> -> vector<8x16xf32>
    %c24 = arith.constant 24 : index
    %c0_39 = arith.constant 0 : index
    %98 = vector.load %arg17[%c24, %c0_39] : memref<32x16xf32, #tpu.memory_space<vmem>>, vector<8x16xf32>
    tpu.vector_store %arg17[%c24, %c0_39], %97 {strides = array<i32>} : memref<32x16xf32, #tpu.memory_space<vmem>>, vector<8x16xf32>,
    %c0_40 = arith.constant 0 : index
    %c0_41 = arith.constant 0 : index
    %99 = vector.load %arg17[%c0_40, %c0_41] : memref<32x16xf32, #tpu.memory_space<vmem>>, vector<32x16xf32>
    %100 = arith.truncf %99 : vector<32x16xf32> to vector<32x16xbf16>
    %c0_42 = arith.constant 0 : index
    %c0_43 = arith.constant 0 : index
    %101 = vector.load %arg9[%c0_42, %c0_43] : memref<32x32xbf16, #tpu.memory_space<vmem>>, vector<32x32xbf16>
    %cst_44 = arith.constant dense<0.000000e+00> : vector<32x16xf32>
    %102 = tpu.matmul %101, %100, %cst_44 {dimension_numbers = #tpu.dot_dimension_numbers<[1], [0], [0], [1], [0, 0, 1, 1], [], []>} : vector<32x32xbf16>, vector<32x16xbf16>, vector<32x16xf32> -> vector<32x16xf32>
    %c0_45 = arith.constant 0 : index
    %c0_46 = arith.constant 0 : index
    %103 = vector.load %arg10[%c0_45, %c0_46] : memref<32x1xf32, #tpu.memory_space<vmem>>, vector<32x1xf32>
    %104 = vector.broadcast %103 : vector<32x1xf32> to vector<32x16xf32>
    %105 = arith.addf %102, %104 : vector<32x16xf32>
    %c0_47 = arith.constant 0 : index
    %c0_48 = arith.constant 0 : index
    %106 = vector.load %arg11[%c0_47, %c0_48] : memref<64x32xbf16, #tpu.memory_space<vmem>>, vector<64x32xbf16>
    %cst_49 = arith.constant dense<0.000000e+00> : vector<64x16xf32>
    %107 = tpu.matmul %106, %1, %cst_49 {dimension_numbers = #tpu.dot_dimension_numbers<[1], [0], [0], [1], [0, 0, 1, 1], [], []>} : vector<64x32xbf16>, vector<32x16xbf16>, vector<64x16xf32> -> vector<64x16xf32>
    %c0_50 = arith.constant 0 : index
    %c0_51 = arith.constant 0 : index
    %108 = vector.load %arg12[%c0_50, %c0_51] : memref<64x32xbf16, #tpu.memory_space<vmem>>, vector<64x32xbf16>
    %109 = arith.truncf %105 : vector<32x16xf32> to vector<32x16xbf16>
    %cst_52 = arith.constant dense<0.000000e+00> : vector<64x16xf32>
    %110 = tpu.matmul %108, %109, %cst_52 {dimension_numbers = #tpu.dot_dimension_numbers<[1], [0], [0], [1], [0, 0, 1, 1], [], []>} : vector<64x32xbf16>, vector<32x16xbf16>, vector<64x16xf32> -> vector<64x16xf32>
    %111 = arith.addf %107, %110 : vector<64x16xf32>
    %c0_53 = arith.constant 0 : index
    %c0_54 = arith.constant 0 : index
    %112 = vector.load %arg13[%c0_53, %c0_54] : memref<64x1xf32, #tpu.memory_space<vmem>>, vector<64x1xf32>
    %113 = vector.broadcast %112 : vector<64x1xf32> to vector<64x16xf32>
    %114 = arith.addf %111, %113 : vector<64x16xf32>
    %cst_55 = arith.constant dense<0.000000e+00> : vector<64xf32>
    %115 = vector.multi_reduction <add>, %114, %cst_55 [1] : vector<64x16xf32> to vector<64xf32>
    %116 = vector.shape_cast %115 : vector<64xf32> to vector<64x1xf32>
    %cst_56 = arith.constant 1.600000e+01 : f32
    %117 = vector.broadcast %cst_56 : f32 to vector<64x1xf32>
    %118 = arith.divf %116, %117 : vector<64x1xf32>
    %119 = arith.mulf %114, %114 : vector<64x16xf32>
    %cst_57 = arith.constant dense<0.000000e+00> : vector<64xf32>
    %120 = vector.multi_reduction <add>, %119, %cst_57 [1] : vector<64x16xf32> to vector<64xf32>
    %121 = vector.shape_cast %120 : vector<64xf32> to vector<64x1xf32>
    %cst_58 = arith.constant 1.600000e+01 : f32
    %122 = vector.broadcast %cst_58 : f32 to vector<64x1xf32>
    %123 = arith.divf %121, %122 : vector<64x1xf32>
    %124 = arith.mulf %118, %118 : vector<64x1xf32>
    %125 = arith.subf %123, %124 : vector<64x1xf32>
    %cst_59 = arith.constant 0.000000e+00 : f32
    %126 = vector.broadcast %cst_59 : f32 to vector<64x1xf32>
    %127 = arith.maximumf %125, %126 : vector<64x1xf32>
    %128 = vector.broadcast %118 : vector<64x1xf32> to vector<64x16xf32>
    %129 = arith.subf %114, %128 : vector<64x16xf32>
    %cst_60 = arith.constant 9.99999974E-6 : f32
    %130 = vector.broadcast %cst_60 : f32 to vector<64x1xf32>
    %131 = arith.addf %127, %130 : vector<64x1xf32>
    %132 = math.rsqrt %131 : vector<64x1xf32>
    %133 = vector.broadcast %132 : vector<64x1xf32> to vector<64x16xf32>
    %134 = arith.mulf %129, %133 : vector<64x16xf32>
    %cst_61 = arith.constant 0.000000e+00 : f32
    %135 = vector.broadcast %cst_61 : f32 to vector<64x16xf32>
    %136 = arith.maximumf %134, %135 : vector<64x16xf32>
    %c0_62 = arith.constant 0 : index
    %c0_63 = arith.constant 0 : index
    %137 = vector.load %arg14[%c0_62, %c0_63] : memref<32x64xbf16, #tpu.memory_space<vmem>>, vector<32x64xbf16>
    %138 = arith.truncf %136 : vector<64x16xf32> to vector<64x16xbf16>
    %cst_64 = arith.constant dense<0.000000e+00> : vector<32x16xf32>
    %139 = tpu.matmul %137, %138, %cst_64 {dimension_numbers = #tpu.dot_dimension_numbers<[1], [0], [0], [1], [0, 0, 1, 1], [], []>} : vector<32x64xbf16>, vector<64x16xbf16>, vector<32x16xf32> -> vector<32x16xf32>
    %c0_65 = arith.constant 0 : index
    %c0_66 = arith.constant 0 : index
    %140 = vector.load %arg15[%c0_65, %c0_66] : memref<32x1xf32, #tpu.memory_space<vmem>>, vector<32x1xf32>
    %141 = vector.broadcast %140 : vector<32x1xf32> to vector<32x16xf32>
    %142 = arith.addf %139, %141 : vector<32x16xf32>
    %c0_67 = arith.constant 0 : index
    %c0_68 = arith.constant 0 : index
    %c0_69 = arith.constant 0 : index
    %143 = vector.load %arg16[%c0_67, %c0_68, %c0_69] : memref<1x32x16xf32, #tpu.memory_space<vmem>>, vector<1x32x16xf32>
    %144 = vector.shape_cast %143 : vector<1x32x16xf32> to vector<32x16xf32>
    %145 = vector.shape_cast %142 : vector<32x16xf32> to vector<1x32x16xf32>
    tpu.vector_store %arg16[%c0_67, %c0_68, %c0_69], %145 {strides = array<i32>} : memref<1x32x16xf32, #tpu.memory_space<vmem>>, vector<1x32x16xf32>,
    return
  }
  func.func @transform_0(%arg0: i32) -> (i32, i32, i32) {
    %c0_i32 = arith.constant 0 : i32
    %c0_i32_0 = arith.constant 0 : i32
    %c0_i32_1 = arith.constant 0 : i32
    return %arg0, %c0_i32, %c0_i32_0 : i32, i32, i32
  }
  func.func @transform_1(%arg0: i32) -> (i32, i32, i32) {
    %c0_i32 = arith.constant 0 : i32
    %c0_i32_0 = arith.constant 0 : i32
    %c0_i32_1 = arith.constant 0 : i32
    return %arg0, %c0_i32, %c0_i32_0 : i32, i32, i32
  }
  func.func @transform_2(%arg0: i32) -> (i32, i32) {
    %c0_i32 = arith.constant 0 : i32
    %c0_i32_0 = arith.constant 0 : i32
    %c0_i32_1 = arith.constant 0 : i32
    return %c0_i32, %c0_i32_0 : i32, i32
  }
  func.func @transform_3(%arg0: i32) -> (i32, i32) {
    %c0_i32 = arith.constant 0 : i32
    %c0_i32_0 = arith.constant 0 : i32
    %c0_i32_1 = arith.constant 0 : i32
    return %c0_i32, %c0_i32_0 : i32, i32
  }
  func.func @transform_4(%arg0: i32) -> (i32, i32) {
    %c0_i32 = arith.constant 0 : i32
    %c0_i32_0 = arith.constant 0 : i32
    %c0_i32_1 = arith.constant 0 : i32
    return %c0_i32, %c0_i32_0 : i32, i32
  }
  func.func @transform_5(%arg0: i32) -> (i32, i32) {
    %c0_i32 = arith.constant 0 : i32
    %c0_i32_0 = arith.constant 0 : i32
    %c0_i32_1 = arith.constant 0 : i32
    return %c0_i32, %c0_i32_0 : i32, i32
  }
  func.func @transform_6(%arg0: i32) -> (i32, i32) {
    %c0_i32 = arith.constant 0 : i32
    %c0_i32_0 = arith.constant 0 : i32
    %c0_i32_1 = arith.constant 0 : i32
    return %c0_i32, %c0_i32_0 : i32, i32
  }
  func.func @transform_7(%arg0: i32) -> (i32, i32) {
    %c0_i32 = arith.constant 0 : i32
    %c0_i32_0 = arith.constant 0 : i32
    %c0_i32_1 = arith.constant 0 : i32
    return %c0_i32, %c0_i32_0 : i32, i32
  }
  func.func @transform_8(%arg0: i32) -> (i32, i32) {
    %c0_i32 = arith.constant 0 : i32
    %c0_i32_0 = arith.constant 0 : i32
    %c0_i32_1 = arith.constant 0 : i32
    return %c0_i32, %c0_i32_0 : i32, i32
  }
  func.func @transform_9(%arg0: i32) -> (i32, i32) {
    %c0_i32 = arith.constant 0 : i32
    %c0_i32_0 = arith.constant 0 : i32
    %c0_i32_1 = arith.constant 0 : i32
    return %c0_i32, %c0_i32_0 : i32, i32
  }
  func.func @transform_10(%arg0: i32) -> (i32, i32) {
    %c0_i32 = arith.constant 0 : i32
    %c0_i32_0 = arith.constant 0 : i32
    %c0_i32_1 = arith.constant 0 : i32
    return %c0_i32, %c0_i32_0 : i32, i32
  }
  func.func @transform_11(%arg0: i32) -> (i32, i32) {
    %c0_i32 = arith.constant 0 : i32
    %c0_i32_0 = arith.constant 0 : i32
    %c0_i32_1 = arith.constant 0 : i32
    return %c0_i32, %c0_i32_0 : i32, i32
  }
  func.func @transform_12(%arg0: i32) -> (i32, i32) {
    %c0_i32 = arith.constant 0 : i32
    %c0_i32_0 = arith.constant 0 : i32
    %c0_i32_1 = arith.constant 0 : i32
    return %c0_i32, %c0_i32_0 : i32, i32
  }
  func.func @transform_13(%arg0: i32) -> (i32, i32) {
    %c0_i32 = arith.constant 0 : i32
    %c0_i32_0 = arith.constant 0 : i32
    %c0_i32_1 = arith.constant 0 : i32
    return %c0_i32, %c0_i32_0 : i32, i32
  }
  func.func @transform_14(%arg0: i32) -> (i32, i32) {
    %c0_i32 = arith.constant 0 : i32
    %c0_i32_0 = arith.constant 0 : i32
    %c0_i32_1 = arith.constant 0 : i32
    return %c0_i32, %c0_i32_0 : i32, i32
  }
  func.func @transform_15(%arg0: i32) -> (i32, i32, i32) {
    %c0_i32 = arith.constant 0 : i32
    %c0_i32_0 = arith.constant 0 : i32
    %c0_i32_1 = arith.constant 0 : i32
    return %arg0, %c0_i32, %c0_i32_0 : i32, i32, i32
  }
}

</mosaic_0001>

<llo_original>
// kernel: tpu_custom_call.1
$region0: #{tpu_custom_call.1}
  #allocation0 [shape = 'u32[]', space=smem, size = 0x4, offset = 0x4, fixed_abs, tag = 'smem constant byte address 0x4 - core index']
  #allocation1 [shape = 'u32[144,128]{1,0:T(1,128)}', space=vmem, size = 0x12000, scoped, tag = 'internal scratch']
  #allocation2 [shape = 'f32[32,16]{1,0:T(8,128)}', space=vmem, size = 0x4000, scoped, tag = 'scratch operand']
  %s0 = inlined_call_operand.vmem [shape: bf16[2,32,16], index: 0, kind: input, shape index: {}]
  %s1 = inlined_call_operand.vmem [shape: bf16[2,32,24], index: 1, kind: input, shape index: {}]
  %s2 = inlined_call_operand.vmem [shape: bf16[32,32], index: 2, kind: input, shape index: {}]
  %s3 = inlined_call_operand.vmem [shape: f32[32,1], index: 3, kind: input, shape index: {}]
  %s4 = inlined_call_operand.vmem [shape: bf16[32,32], index: 4, kind: input, shape index: {}]
  %s5 = inlined_call_operand.vmem [shape: f32[32,1], index: 5, kind: input, shape index: {}]
  %s6 = inlined_call_operand.vmem [shape: bf16[32,32], index: 6, kind: input, shape index: {}]
  %s7 = inlined_call_operand.vmem [shape: f32[32,1], index: 7, kind: input, shape index: {}]
  %s8 = inlined_call_operand.vmem [shape: bf16[32,32], index: 8, kind: input, shape index: {}]
  %s9 = inlined_call_operand.vmem [shape: f32[32,1], index: 9, kind: input, shape index: {}]
  %s10 = inlined_call_operand.vmem [shape: bf16[64,32], index: 10, kind: input, shape index: {}]
  %s11 = inlined_call_operand.vmem [shape: bf16[64,32], index: 11, kind: input, shape index: {}]
  %s12 = inlined_call_operand.vmem [shape: f32[64,1], index: 12, kind: input, shape index: {}]
  %s13 = inlined_call_operand.vmem [shape: bf16[32,64], index: 13, kind: input, shape index: {}]
  %s14 = inlined_call_operand.vmem [shape: f32[32,1], index: 14, kind: input, shape index: {}]
  %s15 = inlined_call_operand.vmem [shape: f32[2,32,16], index: 15, kind: output, shape index: {}]
  %s16 = sld [smem:[#allocation0]]
  $region93: #{tpu_custom_call.1} parent=0
    _
  %s18 = ssub.s32 1, %s16
  %s19 = scalar_select 0, %s18, %s16
  loop: start=0, step=1, limit=4
  $region2: #{tpu_custom_call.1} parent=0 // loop_pre_header
    _
  $region3: #{tpu_custom_call.1} parent=0 // loop_header
    %s21 = sphi 0, %s25
    %p22 = scmp.ge.s32.totalorder %s21, 4
    %s31 = sphi 0, %s33
    %s34 = sphi 0, %s31
    %s35 = sphi 0, %s34
    %s51 = sphi 0, %s35
    %s57 = sphi 0, %s59
    %s60 = sphi 0, %s57
    %s61 = sphi 0, %s60
    %s77 = sphi 0, %s61
    %s81 = sphi 0, %s81
    %s83 = sphi 0, %s81
    %s84 = sphi 0, %s83
    %s98 = sphi 0, %s84
    %s102 = sphi 0, %s102
    %s104 = sphi 0, %s102
    %s105 = sphi 0, %s104
    %s119 = sphi 0, %s105
    %s123 = sphi 0, %s123
    %s125 = sphi 0, %s123
    %s126 = sphi 0, %s125
    %s140 = sphi 0, %s126
    %s144 = sphi 0, %s144
    %s146 = sphi 0, %s144
    %s147 = sphi 0, %s146
    %s161 = sphi 0, %s147
    %s165 = sphi 0, %s165
    %s167 = sphi 0, %s165
    %s168 = sphi 0, %s167
    %s182 = sphi 0, %s168
    %s186 = sphi 0, %s186
    %s188 = sphi 0, %s186
    %s189 = sphi 0, %s188
    %s203 = sphi 0, %s189
    %s207 = sphi 0, %s207
    %s209 = sphi 0, %s207
    %s210 = sphi 0, %s209
    %s224 = sphi 0, %s210
    %s228 = sphi 0, %s228
    %s230 = sphi 0, %s228
    %s231 = sphi 0, %s230
    %s245 = sphi 0, %s231
    %s249 = sphi 0, %s249
    %s251 = sphi 0, %s249
    %s252 = sphi 0, %s251
    %s266 = sphi 0, %s252
    %s270 = sphi 0, %s270
    %s272 = sphi 0, %s270
    %s273 = sphi 0, %s272
    %s287 = sphi 0, %s273
    %s291 = sphi 0, %s291
    %s293 = sphi 0, %s291
    %s294 = sphi 0, %s293
    %s308 = sphi 0, %s294
    %s312 = sphi 0, %s312
    %s314 = sphi 0, %s312
    %s315 = sphi 0, %s314
    %s329 = sphi 0, %s315
    %s333 = sphi 0, %s333
    %s335 = sphi 0, %s333
    %s336 = sphi 0, %s335
    %s350 = sphi 0, %s336
    %s356 = sphi 0, %s358
    %s359 = sphi 0, %s356
    %s360 = sphi 0, %s359
    %s376 = sphi 0, %s360
  $region4: #{tpu_custom_call.1} parent=0 // loop_header_branch
    %24 = sbr.rel (%p22) target = $region8
  $region5: #{tpu_custom_call.1} parent=0 // loop_body
    %s26 = ssub.s32 %s21, 1
    %s27 = ssub.s32 %s21, 2
    %s28 = sadd.s32 %s21, 1
    %s29 = ssub.s32 %s21, %s28
    %p30 = scmp.eq.s32.totalorder %s29, 0
    %s32 = sadd.s32 %s31, 1
    %s33 = scalar_select %p30, %s31, %s32
    %p36 = pneg %p30
    %p37 = scmp.eq.s32.totalorder %s21, 1
    %p38 = por %p36, %p37
    %p39 = scmp.ne.s32.totalorder %s31, %s34
    %p40 = scmp.eq.s32.totalorder %s21, 0
    %p41 = por %p39, %p40
    %p42 = scmp.ne.s32.totalorder %s31, %s34
    %p43 = scmp.eq.s32.totalorder %s26, 1
    %p44 = por %p42, %p43
    %p45 = scmp.ne.s32.totalorder %s34, %s35
    %p46 = scmp.eq.s32.totalorder %s26, 0
    %p47 = por %p45, %p46
    %p48 = scmp.ne.s32.totalorder %s34, %s35
    %p49 = scmp.eq.s32.totalorder %s27, 1
    %p50 = por %p48, %p49
    %p52 = scmp.ne.s32.totalorder %s35, %s51
    %p53 = scmp.eq.s32.totalorder %s27, 0
    %p54 = por %p52, %p53
    %s55 = ssub.s32 %s21, %s28
    %p56 = scmp.eq.s32.totalorder %s55, 0
    %s58 = sadd.s32 %s57, 1
    %s59 = scalar_select %p56, %s57, %s58
    %p62 = pneg %p56
    %p63 = scmp.eq.s32.totalorder %s21, 1
    %p64 = por %p62, %p63
    %p65 = scmp.ne.s32.totalorder %s57, %s60
    %p66 = scmp.eq.s32.totalorder %s21, 0
    %p67 = por %p65, %p66
    %p68 = scmp.ne.s32.totalorder %s57, %s60
    %p69 = scmp.eq.s32.totalorder %s26, 1
    %p70 = por %p68, %p69
    %p71 = scmp.ne.s32.totalorder %s60, %s61
    %p72 = scmp.eq.s32.totalorder %s26, 0
    %p73 = por %p71, %p72
    %p74 = scmp.ne.s32.totalorder %s60, %s61
    %p75 = scmp.eq.s32.totalorder %s27, 1
    %p76 = por %p74, %p75
    %p78 = scmp.ne.s32.totalorder %s61, %s77
    %p79 = scmp.eq.s32.totalorder %s27, 0
    %p80 = por %p78, %p79
    %s82 = sadd.s32 %s81, 1
    %p85 = scmp.eq.s32.totalorder %s21, 1
    %p86 = scmp.ne.s32.totalorder %s81, %s83
    %p87 = scmp.eq.s32.totalorder %s21, 0
    %p88 = por %p86, %p87
    %p89 = scmp.ne.s32.totalorder %s81, %s83
    %p90 = scmp.eq.s32.totalorder %s26, 1
    %p91 = por %p89, %p90
    %p92 = scmp.ne.s32.totalorder %s83, %s84
    %p93 = scmp.eq.s32.totalorder %s26, 0
    %p94 = por %p92, %p93
    %p95 = scmp.ne.s32.totalorder %s83, %s84
    %p96 = scmp.eq.s32.totalorder %s27, 1
    %p97 = por %p95, %p96
    %p99 = scmp.ne.s32.totalorder %s84, %s98
    %p100 = scmp.eq.s32.totalorder %s27, 0
    %p101 = por %p99, %p100
    %s103 = sadd.s32 %s102, 1
    %p106 = scmp.eq.s32.totalorder %s21, 1
    %p107 = scmp.ne.s32.totalorder %s102, %s104
    %p108 = scmp.eq.s32.totalorder %s21, 0
    %p109 = por %p107, %p108
    %p110 = scmp.ne.s32.totalorder %s102, %s104
    %p111 = scmp.eq.s32.totalorder %s26, 1
    %p112 = por %p110, %p111
    %p113 = scmp.ne.s32.totalorder %s104, %s105
    %p114 = scmp.eq.s32.totalorder %s26, 0
    %p115 = por %p113, %p114
    %p116 = scmp.ne.s32.totalorder %s104, %s105
    %p117 = scmp.eq.s32.totalorder %s27, 1
    %p118 = por %p116, %p117
    %p120 = scmp.ne.s32.totalorder %s105, %s119
    %p121 = scmp.eq.s32.totalorder %s27, 0
    %p122 = por %p120, %p121
    %s124 = sadd.s32 %s123, 1
    %p127 = scmp.eq.s32.totalorder %s21, 1
    %p128 = scmp.ne.s32.totalorder %s123, %s125
    %p129 = scmp.eq.s32.totalorder %s21, 0
    %p130 = por %p128, %p129
    %p131 = scmp.ne.s32.totalorder %s123, %s125
    %p132 = scmp.eq.s32.totalorder %s26, 1
    %p133 = por %p131, %p132
    %p134 = scmp.ne.s32.totalorder %s125, %s126
    %p135 = scmp.eq.s32.totalorder %s26, 0
    %p136 = por %p134, %p135
    %p137 = scmp.ne.s32.totalorder %s125, %s126
    %p138 = scmp.eq.s32.totalorder %s27, 1
    %p139 = por %p137, %p138
    %p141 = scmp.ne.s32.totalorder %s126, %s140
    %p142 = scmp.eq.s32.totalorder %s27, 0
    %p143 = por %p141, %p142
    %s145 = sadd.s32 %s144, 1
    %p148 = scmp.eq.s32.totalorder %s21, 1
    %p149 = scmp.ne.s32.totalorder %s144, %s146
    %p150 = scmp.eq.s32.totalorder %s21, 0
    %p151 = por %p149, %p150
    %p152 = scmp.ne.s32.totalorder %s144, %s146
    %p153 = scmp.eq.s32.totalorder %s26, 1
    %p154 = por %p152, %p153
    %p155 = scmp.ne.s32.totalorder %s146, %s147
    %p156 = scmp.eq.s32.totalorder %s26, 0
    %p157 = por %p155, %p156
    %p158 = scmp.ne.s32.totalorder %s146, %s147
    %p159 = scmp.eq.s32.totalorder %s27, 1
    %p160 = por %p158, %p159
    %p162 = scmp.ne.s32.totalorder %s147, %s161
    %p163 = scmp.eq.s32.totalorder %s27, 0
    %p164 = por %p162, %p163
    %s166 = sadd.s32 %s165, 1
    %p169 = scmp.eq.s32.totalorder %s21, 1
    %p170 = scmp.ne.s32.totalorder %s165, %s167
    %p171 = scmp.eq.s32.totalorder %s21, 0
    %p172 = por %p170, %p171
    %p173 = scmp.ne.s32.totalorder %s165, %s167
    %p174 = scmp.eq.s32.totalorder %s26, 1
    %p175 = por %p173, %p174
    %p176 = scmp.ne.s32.totalorder %s167, %s168
    %p177 = scmp.eq.s32.totalorder %s26, 0
    %p178 = por %p176, %p177
    %p179 = scmp.ne.s32.totalorder %s167, %s168
    %p180 = scmp.eq.s32.totalorder %s27, 1
    %p181 = por %p179, %p180
    %p183 = scmp.ne.s32.totalorder %s168, %s182
    %p184 = scmp.eq.s32.totalorder %s27, 0
    %p185 = por %p183, %p184
    %s187 = sadd.s32 %s186, 1
    %p190 = scmp.eq.s32.totalorder %s21, 1
    %p191 = scmp.ne.s32.totalorder %s186, %s188
    %p192 = scmp.eq.s32.totalorder %s21, 0
    %p193 = por %p191, %p192
    %p194 = scmp.ne.s32.totalorder %s186, %s188
    %p195 = scmp.eq.s32.totalorder %s26, 1
    %p196 = por %p194, %p195
    %p197 = scmp.ne.s32.totalorder %s188, %s189
    %p198 = scmp.eq.s32.totalorder %s26, 0
    %p199 = por %p197, %p198
    %p200 = scmp.ne.s32.totalorder %s188, %s189
    %p201 = scmp.eq.s32.totalorder %s27, 1
    %p202 = por %p200, %p201
    %p204 = scmp.ne.s32.totalorder %s189, %s203
    %p205 = scmp.eq.s32.totalorder %s27, 0
    %p206 = por %p204, %p205
    %s208 = sadd.s32 %s207, 1
    %p211 = scmp.eq.s32.totalorder %s21, 1
    %p212 = scmp.ne.s32.totalorder %s207, %s209
    %p213 = scmp.eq.s32.totalorder %s21, 0
    %p214 = por %p212, %p213
    %p215 = scmp.ne.s32.totalorder %s207, %s209
    %p216 = scmp.eq.s32.totalorder %s26, 1
    %p217 = por %p215, %p216
    %p218 = scmp.ne.s32.totalorder %s209, %s210
    %p219 = scmp.eq.s32.totalorder %s26, 0
    %p220 = por %p218, %p219
    %p221 = scmp.ne.s32.totalorder %s209, %s210
    %p222 = scmp.eq.s32.totalorder %s27, 1
    %p223 = por %p221, %p222
    %p225 = scmp.ne.s32.totalorder %s210, %s224
    %p226 = scmp.eq.s32.totalorder %s27, 0
    %p227 = por %p225, %p226
    %s229 = sadd.s32 %s228, 1
    %p232 = scmp.eq.s32.totalorder %s21, 1
    %p233 = scmp.ne.s32.totalorder %s228, %s230
    %p234 = scmp.eq.s32.totalorder %s21, 0
    %p235 = por %p233, %p234
    %p236 = scmp.ne.s32.totalorder %s228, %s230
    %p237 = scmp.eq.s32.totalorder %s26, 1
    %p238 = por %p236, %p237
    %p239 = scmp.ne.s32.totalorder %s230, %s231
    %p240 = scmp.eq.s32.totalorder %s26, 0
    %p241 = por %p239, %p240
    %p242 = scmp.ne.s32.totalorder %s230, %s231
    %p243 = scmp.eq.s32.totalorder %s27, 1
    %p244 = por %p242, %p243
    %p246 = scmp.ne.s32.totalorder %s231, %s245
    %p247 = scmp.eq.s32.totalorder %s27, 0
    %p248 = por %p246, %p247
    %s250 = sadd.s32 %s249, 1
    %p253 = scmp.eq.s32.totalorder %s21, 1
    %p254 = scmp.ne.s32.totalorder %s249, %s251
    %p255 = scmp.eq.s32.totalorder %s21, 0
    %p256 = por %p254, %p255
    %p257 = scmp.ne.s32.totalorder %s249, %s251
    %p258 = scmp.eq.s32.totalorder %s26, 1
    %p259 = por %p257, %p258
    %p260 = scmp.ne.s32.totalorder %s251, %s252
    %p261 = scmp.eq.s32.totalorder %s26, 0
    %p262 = por %p260, %p261
    %p263 = scmp.ne.s32.totalorder %s251, %s252
    %p264 = scmp.eq.s32.totalorder %s27, 1
    %p265 = por %p263, %p264
    %p267 = scmp.ne.s32.totalorder %s252, %s266
    %p268 = scmp.eq.s32.totalorder %s27, 0
    %p269 = por %p267, %p268
    %s271 = sadd.s32 %s270, 1
    %p274 = scmp.eq.s32.totalorder %s21, 1
    %p275 = scmp.ne.s32.totalorder %s270, %s272
    %p276 = scmp.eq.s32.totalorder %s21, 0
    %p277 = por %p275, %p276
    %p278 = scmp.ne.s32.totalorder %s270, %s272
    %p279 = scmp.eq.s32.totalorder %s26, 1
    %p280 = por %p278, %p279
    %p281 = scmp.ne.s32.totalorder %s272, %s273
    %p282 = scmp.eq.s32.totalorder %s26, 0
    %p283 = por %p281, %p282
    %p284 = scmp.ne.s32.totalorder %s272, %s273
    %p285 = scmp.eq.s32.totalorder %s27, 1
    %p286 = por %p284, %p285
    %p288 = scmp.ne.s32.totalorder %s273, %s287
    %p289 = scmp.eq.s32.totalorder %s27, 0
    %p290 = por %p288, %p289
    %s292 = sadd.s32 %s291, 1
    %p295 = scmp.eq.s32.totalorder %s21, 1
    %p296 = scmp.ne.s32.totalorder %s291, %s293
    %p297 = scmp.eq.s32.totalorder %s21, 0
    %p298 = por %p296, %p297
    %p299 = scmp.ne.s32.totalorder %s291, %s293
    %p300 = scmp.eq.s32.totalorder %s26, 1
    %p301 = por %p299, %p300
    %p302 = scmp.ne.s32.totalorder %s293, %s294
    %p303 = scmp.eq.s32.totalorder %s26, 0
    %p304 = por %p302, %p303
    %p305 = scmp.ne.s32.totalorder %s293, %s294
    %p306 = scmp.eq.s32.totalorder %s27, 1
    %p307 = por %p305, %p306
    %p309 = scmp.ne.s32.totalorder %s294, %s308
    %p310 = scmp.eq.s32.totalorder %s27, 0
    %p311 = por %p309, %p310
    %s313 = sadd.s32 %s312, 1
    %p316 = scmp.eq.s32.totalorder %s21, 1
    %p317 = scmp.ne.s32.totalorder %s312, %s314
    %p318 = scmp.eq.s32.totalorder %s21, 0
    %p319 = por %p317, %p318
    %p320 = scmp.ne.s32.totalorder %s312, %s314
    %p321 = scmp.eq.s32.totalorder %s26, 1
    %p322 = por %p320, %p321
    %p323 = scmp.ne.s32.totalorder %s314, %s315
    %p324 = scmp.eq.s32.totalorder %s26, 0
    %p325 = por %p323, %p324
    %p326 = scmp.ne.s32.totalorder %s314, %s315
    %p327 = scmp.eq.s32.totalorder %s27, 1
    %p328 = por %p326, %p327
    %p330 = scmp.ne.s32.totalorder %s315, %s329
    %p331 = scmp.eq.s32.totalorder %s27, 0
    %p332 = por %p330, %p331
    %s334 = sadd.s32 %s333, 1
    %p337 = scmp.eq.s32.totalorder %s21, 1
    %p338 = scmp.ne.s32.totalorder %s333, %s335
    %p339 = scmp.eq.s32.totalorder %s21, 0
    %p340 = por %p338, %p339
    %p341 = scmp.ne.s32.totalorder %s333, %s335
    %p342 = scmp.eq.s32.totalorder %s26, 1
    %p343 = por %p341, %p342
    %p344 = scmp.ne.s32.totalorder %s335, %s336
    %p345 = scmp.eq.s32.totalorder %s26, 0
    %p346 = por %p344, %p345
    %p347 = scmp.ne.s32.totalorder %s335, %s336
    %p348 = scmp.eq.s32.totalorder %s27, 1
    %p349 = por %p347, %p348
    %p351 = scmp.ne.s32.totalorder %s336, %s350
    %p352 = scmp.eq.s32.totalorder %s27, 0
    %p353 = por %p351, %p352
    %s354 = ssub.s32 %s21, %s28
    %p355 = scmp.eq.s32.totalorder %s354, 0
    %s357 = sadd.s32 %s356, 1
    %s358 = scalar_select %p355, %s356, %s357
    %p361 = pneg %p355
    %p362 = scmp.eq.s32.totalorder %s21, 1
    %p363 = por %p361, %p362
    %p364 = scmp.ne.s32.totalorder %s356, %s359
    %p365 = scmp.eq.s32.totalorder %s21, 0
    %p366 = por %p364, %p365
    %p367 = scmp.ne.s32.totalorder %s356, %s359
    %p368 = scmp.eq.s32.totalorder %s26, 1
    %p369 = por %p367, %p368
    %p370 = scmp.ne.s32.totalorder %s359, %s360
    %p371 = scmp.eq.s32.totalorder %s26, 0
    %p372 = por %p370, %p371
    %p373 = scmp.ne.s32.totalorder %s359, %s360
    %p374 = scmp.eq.s32.totalorder %s27, 1
    %p375 = por %p373, %p374
    %p377 = scmp.ne.s32.totalorder %s360, %s376
    %p378 = scmp.eq.s32.totalorder %s27, 0
    %p379 = por %p377, %p378
    %p380 = scmp.le.s32.totalorder 1, %s21
    %p381 = scmp.lt.s32.totalorder %s21, 3
    %p382 = pnand %p380, %p381
    %p383 = pneg %p382
    // Predicated region
    $region9: #{tpu_custom_call.1} parent=5 // pred_check
      _
    $region10: #{tpu_custom_call.1} parent=5 // pred_check_branch
      %385 = sbr.rel (%p382) target = $region12
    $region11: #{tpu_custom_call.1} parent=5 // pred_region
      %s386 = ssub.s32 %s21, 1
      // Predicated region
      $region13: #{tpu_custom_call.1} parent=11 // pred_check
        %p387 = pneg %p94
      $region14: #{tpu_custom_call.1} parent=11 // pred_check_branch
        %389 = sbr.rel (%p387) target = $region16
      $region15: #{tpu_custom_call.1} parent=11 // pred_region
        _
      $region16: #{tpu_custom_call.1} parent=11 // pred_fallthru
        _
      // Predicated region
      $region17: #{tpu_custom_call.1} parent=11 // pred_check
        %p390 = pneg %p115
      $region18: #{tpu_custom_call.1} parent=11 // pred_check_branch
        %392 = sbr.rel (%p390) target = $region20
      $region19: #{tpu_custom_call.1} parent=11 // pred_region
        _
      $region20: #{tpu_custom_call.1} parent=11 // pred_fallthru
        _
      // Predicated region
      $region21: #{tpu_custom_call.1} parent=11 // pred_check
        %p393 = pneg %p136
      $region22: #{tpu_custom_call.1} parent=11 // pred_check_branch
        %395 = sbr.rel (%p393) target = $region24
      $region23: #{tpu_custom_call.1} parent=11 // pred_region
        _
      $region24: #{tpu_custom_call.1} parent=11 // pred_fallthru
        _
      // Predicated region
      $region25: #{tpu_custom_call.1} parent=11 // pred_check
        %p396 = pneg %p157
      $region26: #{tpu_custom_call.1} parent=11 // pred_check_branch
        %398 = sbr.rel (%p396) target = $region28
      $region27: #{tpu_custom_call.1} parent=11 // pred_region
        _
      $region28: #{tpu_custom_call.1} parent=11 // pred_fallthru
        _
      // Predicated region
      $region29: #{tpu_custom_call.1} parent=11 // pred_check
        %p399 = pneg %p178
      $region30: #{tpu_custom_call.1} parent=11 // pred_check_branch
        %401 = sbr.rel (%p399) target = $region32
      $region31: #{tpu_custom_call.1} parent=11 // pred_region
        _
      $region32: #{tpu_custom_call.1} parent=11 // pred_fallthru
        _
      // Predicated region
      $region33: #{tpu_custom_call.1} parent=11 // pred_check
        %p402 = pneg %p199
      $region34: #{tpu_custom_call.1} parent=11 // pred_check_branch
        %404 = sbr.rel (%p402) target = $region36
      $region35: #{tpu_custom_call.1} parent=11 // pred_region
        _
      $region36: #{tpu_custom_call.1} parent=11 // pred_fallthru
        _
      // Predicated region
      $region37: #{tpu_custom_call.1} parent=11 // pred_check
        %p405 = pneg %p220
      $region38: #{tpu_custom_call.1} parent=11 // pred_check_branch
        %407 = sbr.rel (%p405) target = $region40
      $region39: #{tpu_custom_call.1} parent=11 // pred_region
        _
      $region40: #{tpu_custom_call.1} parent=11 // pred_fallthru
        _
      // Predicated region
      $region41: #{tpu_custom_call.1} parent=11 // pred_check
        %p408 = pneg %p241
      $region42: #{tpu_custom_call.1} parent=11 // pred_check_branch
        %410 = sbr.rel (%p408) target = $region44
      $region43: #{tpu_custom_call.1} parent=11 // pred_region
        _
      $region44: #{tpu_custom_call.1} parent=11 // pred_fallthru
        _
      // Predicated region
      $region45: #{tpu_custom_call.1} parent=11 // pred_check
        %p411 = pneg %p262
      $region46: #{tpu_custom_call.1} parent=11 // pred_check_branch
        %413 = sbr.rel (%p411) target = $region48
      $region47: #{tpu_custom_call.1} parent=11 // pred_region
        _
      $region48: #{tpu_custom_call.1} parent=11 // pred_fallthru
        _
      // Predicated region
      $region49: #{tpu_custom_call.1} parent=11 // pred_check
        %p414 = pneg %p283
      $region50: #{tpu_custom_call.1} parent=11 // pred_check_branch
        %416 = sbr.rel (%p414) target = $region52
      $region51: #{tpu_custom_call.1} parent=11 // pred_region
        _
      $region52: #{tpu_custom_call.1} parent=11 // pred_fallthru
        _
      // Predicated region
      $region53: #{tpu_custom_call.1} parent=11 // pred_check
        %p417 = pneg %p304
      $region54: #{tpu_custom_call.1} parent=11 // pred_check_branch
        %419 = sbr.rel (%p417) target = $region56
      $region55: #{tpu_custom_call.1} parent=11 // pred_region
        _
      $region56: #{tpu_custom_call.1} parent=11 // pred_fallthru
        _
      // Predicated region
      $region57: #{tpu_custom_call.1} parent=11 // pred_check
        %p420 = pneg %p325
      $region58: #{tpu_custom_call.1} parent=11 // pred_check_branch
        %422 = sbr.rel (%p420) target = $region60
      $region59: #{tpu_custom_call.1} parent=11 // pred_region
        _
      $region60: #{tpu_custom_call.1} parent=11 // pred_fallthru
        _
      // Predicated region
      $region61: #{tpu_custom_call.1} parent=11 // pred_check
        %p423 = pneg %p346
      $region62: #{tpu_custom_call.1} parent=11 // pred_check_branch
        %425 = sbr.rel (%p423) target = $region64
      $region63: #{tpu_custom_call.1} parent=11 // pred_region
        _
      $region64: #{tpu_custom_call.1} parent=11 // pred_fallthru
        _
    $region12: #{tpu_custom_call.1} parent=5 // pred_fallthru
      _
    %p426 = scmp.lt.s32.totalorder %s21, 2
    // Predicated region
    $region65: #{tpu_custom_call.1} parent=5 // pred_check
      %p427 = pneg %p426
    $region66: #{tpu_custom_call.1} parent=5 // pred_check_branch
      %429 = sbr.rel (%p427) target = $region68
    $region67: #{tpu_custom_call.1} parent=5 // pred_region
      // Predicated region
      $region69: #{tpu_custom_call.1} parent=67 // pred_check
        %p430 = pneg %p41
      $region70: #{tpu_custom_call.1} parent=67 // pred_check_branch
        %432 = sbr.rel (%p430) target = $region72
      $region71: #{tpu_custom_call.1} parent=67 // pred_region
        %p433 = scmp.lt.s32.totalorder %s21, 1
        %s434 = scalar_select %p433, %s21, 1
        %s435 = smul.addr %s434, 4
        %s436 = smul.addr %s435, 4
        %s437 = scalar_lea.vmem %s0, %s436
      $region72: #{tpu_custom_call.1} parent=67 // pred_fallthru
        _
      // Predicated region
      $region73: #{tpu_custom_call.1} parent=67 // pred_check
        %p438 = pneg %p67
      $region74: #{tpu_custom_call.1} parent=67 // pred_check_branch
        %440 = sbr.rel (%p438) target = $region76
      $region75: #{tpu_custom_call.1} parent=67 // pred_region
        %p441 = scmp.lt.s32.totalorder %s21, 1
        %s442 = scalar_select %p441, %s21, 1
        %s443 = smul.addr %s442, 4
        %s444 = smul.addr %s443, 4
        %s445 = scalar_lea.vmem %s1, %s444
      $region76: #{tpu_custom_call.1} parent=67 // pred_fallthru
        _
    $region68: #{tpu_custom_call.1} parent=5 // pred_fallthru
      _
    %p446 = scmp.le.s32.totalorder 1, %s21
    %p447 = scmp.lt.s32.totalorder %s21, 3
    %p448 = pnand %p446, %p447
    %p449 = pneg %p448
    // Predicated region
    $region77: #{tpu_custom_call.1} parent=5 // pred_check
      _
    $region78: #{tpu_custom_call.1} parent=5 // pred_check_branch
      %451 = sbr.rel (%p448) target = $region80
    $region79: #{tpu_custom_call.1} parent=5 // pred_region
      %s452 = ssub.s32 %s21, 1
      %p453 = scmp.lt.s32.totalorder %s26, 1
      %s454 = scalar_select %p453, %s26, 1
      %s455 = smul.addr %s454, 4
      %s456 = smul.addr %s455, 4
      %s457 = scalar_lea.vmem %s0, %s456
      %p458 = pneg %p47
      %p459 = pneg %p44
      %p460 = scmp.lt.s32.totalorder %s26, 1
      %s461 = scalar_select %p460, %s26, 1
      %s462 = smul.addr %s461, 4
      %s463 = smul.addr %s462, 4
      %s464 = scalar_lea.vmem %s1, %s463
      %p465 = pneg %p73
      %p466 = pneg %p70
      %p467 = pneg %p94
      %p468 = pneg %p91
      %p469 = pneg %p115
      %p470 = pneg %p112
      %p471 = pneg %p136
      %p472 = pneg %p133
      %p473 = pneg %p157
      %p474 = pneg %p154
      %p475 = pneg %p178
      %p476 = pneg %p175
      %p477 = pneg %p199
      %p478 = pneg %p196
      %p479 = pneg %p220
      %p480 = pneg %p217
      %p481 = pneg %p241
      %p482 = pneg %p238
      %p483 = pneg %p262
      %p484 = pneg %p259
      %p485 = pneg %p283
      %p486 = pneg %p280
      %p487 = pneg %p304
      %p488 = pneg %p301
      %p489 = pneg %p325
      %p490 = pneg %p322
      %p491 = pneg %p346
      %p492 = pneg %p343
      %p493 = pneg %p372
      %p494 = pneg %p369
      %p495 = scmp.lt.s32.totalorder %s26, 1
      %s496 = scalar_select %p495, %s26, 1
      %s497 = smul.addr %s496, 4
      %s498 = smul.addr %s497, 8
      %s499 = scalar_lea.vmem %s15, %s498
      %p500 = scmp.lt.s32.totalorder %s26, 1
      %s501 = scalar_select %p500, %s26, 1
      %s502 = smul.addr %s501, 4
      %s503 = smul.addr %s502, 4
      %s504 = scalar_lea.vmem %s0, %s503
      %p505 = scmp.lt.s32.totalorder %s26, 1
      %s506 = scalar_select %p505, %s26, 1
      %s507 = smul.addr %s506, 4
      %s508 = smul.addr %s507, 4
      %s509 = scalar_lea.vmem %s1, %s508
      %p510 = scmp.lt.s32.totalorder %s26, 1
      %s511 = scalar_select %p510, %s26, 1
      %s512 = smul.addr %s511, 4
      %s513 = smul.addr %s512, 8
      %s514 = scalar_lea.vmem %s15, %s513
      %v516 = vld [vmem:[%s504] sm:$0xf]
      %v517 = vld [vmem:[%s504 + $0x4] sm:$0xf]
      %v518 = vld [vmem:[%s504 + $0x8] sm:$0xf]
      %v519 = vld [vmem:[%s504 + $0xc] sm:$0xf]
      %v520 = vld [vmem:[%s509] sm:$0xf]
      %v521 = vld [vmem:[%s509 + $0x4] sm:$0xf]
      %v522 = vld [vmem:[%s509 + $0x8] sm:$0xf]
      %v523 = vld [vmem:[%s509 + $0xc] sm:$0xf]
      %v524 = vld [vmem:[%s2] sm:$0xf]
      %v525 = vld [vmem:[%s2 + $0x4] sm:$0xf]
      %v526 = vld [vmem:[%s2 + $0x8] sm:$0xf]
      %v527 = vld [vmem:[%s2 + $0xc] sm:$0xf]
      %v528 = vld [vmem:[%s3] sm:$0xff]
      %v529 = vld [vmem:[%s3 + $0x8] sm:$0xff]
      %v530 = vld [vmem:[%s3 + $0x10] sm:$0xff]
      %v531 = vld [vmem:[%s3 + $0x18] sm:$0xff]
      %533 = vset.pattern.permute.xlu0 0
      %534 = vperm.xlu0 %533, %v528
      %v535 = vpop.permute.xlu0 %534
      %538 = vset.pattern.permute.xlu0 0
      %539 = vperm.xlu0 %538, %v529
      %v540 = vpop.permute.xlu0 %539
      %543 = vset.pattern.permute.xlu0 0
      %544 = vperm.xlu0 %543, %v530
      %v545 = vpop.permute.xlu0 %544
      %548 = vset.pattern.permute.xlu0 0
      %549 = vperm.xlu0 %548, %v531
      %v550 = vpop.permute.xlu0 %549
      %v556 = vunpack.c.l.b16 %v524
      %v557 = vunpack.c.l.b16 %v525
      %v558 = vunpack.c.l.b16 %v526
      %v559 = vunpack.c.l.b16 %v527
      %v560 = vpack.c.b16 %v557, %v556
      %v561 = vpack.c.b16 %v559, %v558
      %v566 = vunpack.c.l.b16 %v516
      %v567 = vunpack.c.l.b16 %v517
      %v568 = vunpack.c.l.b16 %v518
      %v569 = vunpack.c.l.b16 %v519
      %v570 = vpack.c.b16 %v567, %v566
      %v571 = vpack.c.b16 %v569, %v568
      %vm574 = vcmask 261120
      %v576 = vsel %vm574, %v560, 0
      %v579 = vsel %vm574, %v561, 0
      %581 = vmatprep.subr.bf16.mxu0 0
      %582 = vmatpush1.bf16.msra.mxu0 %v570
      %583 = vmatprep.subr.bf16.mxu0 0
      %584 = vmatpush1.bf16.msra.mxu0 %v571
      %585 = vmatprep.subr.bf16.mxu0 0
      %586 = vmatpush1.bf16.msra.mxu0 0
      %587 = vmatprep.subr.bf16.mxu0 0
      %588 = vmatpush1.bf16.msra.mxu0 0
      %589 = vmatprep.subr.bf16.mxu0 0
      %590 = vmatpush1.bf16.msra.mxu0 0
      %591 = vmatprep.subr.bf16.mxu0 0
      %592 = vmatpush1.bf16.msra.mxu0 0
      %593 = vmatprep.subr.bf16.mxu0 0
      %594 = vmatpush1.bf16.msra.mxu0 0
      %595 = vmatprep.subr.bf16.mxu0 0
      %596 = vmatpush1.bf16.msra.mxu0 0
      %597 = vmatprep.subr.bf16.mxu0 0
      %598 = vmatpush1.bf16.msra.mxu0 0
      %599 = vmatprep.subr.bf16.mxu0 0
      %600 = vmatpush1.bf16.msra.mxu0 0
      %601 = vmatprep.subr.bf16.mxu0 0
      %602 = vmatpush1.bf16.msra.mxu0 0
      %603 = vmatprep.subr.bf16.mxu0 0
      %604 = vmatpush1.bf16.msra.mxu0 0
      %605 = vmatprep.subr.bf16.mxu0 0
      %606 = vmatpush1.bf16.msra.mxu0 0
      %607 = vmatprep.subr.bf16.mxu0 0
      %608 = vmatpush1.bf16.msra.mxu0 0
      %609 = vmatprep.subr.bf16.mxu0 0
      %610 = vmatpush1.bf16.msra.mxu0 0
      %611 = vmatprep.subr.bf16.mxu0 0
      %612 = vmatpush1.bf16.msra.mxu0 0
      %613 = vmatprep.mubr.bf16.mxu0 0
      %614 = vmatmul.mubr.bf16.gmra.mrb[0].mxu0 %v576
      %v615 = vpop.f32.mrb[0].mxu0
      %v616 = vadd.f32 %v535, %v615
      %v617 = vpop.f32.mrb[0].mxu0
      %v618 = vpop.f32.mrb[0].mxu0
      %v619 = vadd.f32 %v540, %v618
      %v620 = vpop.f32.mrb[0].mxu0
      %621 = vmatprep.mubr.bf16.mxu0 0
      %622 = vmatmul.mubr.bf16.gmra.mrb[0].mxu0 %v579
      %v623 = vpop.f32.mrb[0].mxu0
      %v624 = vadd.f32 %v545, %v623
      %v625 = vpop.f32.mrb[0].mxu0
      %v626 = vpop.f32.mrb[0].mxu0
      %v627 = vadd.f32 %v550, %v626
      %v628 = vpop.f32.mrb[0].mxu0
      %629 = vdwg.mxu0
      %v630 = vld [vmem:[%s4] sm:$0xf]
      %v631 = vld [vmem:[%s4 + $0x4] sm:$0xf]
      %v632 = vld [vmem:[%s4 + $0x8] sm:$0xf]
      %v633 = vld [vmem:[%s4 + $0xc] sm:$0xf]
      %v634 = vld [vmem:[%s5] sm:$0xff]
      %v635 = vld [vmem:[%s5 + $0x8] sm:$0xff]
      %v636 = vld [vmem:[%s5 + $0x10] sm:$0xff]
      %v637 = vld [vmem:[%s5 + $0x18] sm:$0xff]
      %639 = vset.pattern.permute.xlu0 0
      %640 = vperm.xlu0 %639, %v634
      %v641 = vpop.permute.xlu0 %640
      %644 = vset.pattern.permute.xlu0 0
      %645 = vperm.xlu0 %644, %v635
      %v646 = vpop.permute.xlu0 %645
      %649 = vset.pattern.permute.xlu0 0
      %650 = vperm.xlu0 %649, %v636
      %v651 = vpop.permute.xlu0 %650
      %654 = vset.pattern.permute.xlu0 0
      %655 = vperm.xlu0 %654, %v637
      %v656 = vpop.permute.xlu0 %655
      %v662 = vunpack.c.l.b16 %v630
      %v663 = vunpack.c.l.b16 %v631
      %v664 = vunpack.c.l.b16 %v632
      %v665 = vunpack.c.l.b16 %v633
      %v666 = vpack.c.b16 %v663, %v662
      %v667 = vpack.c.b16 %v665, %v664
      %v672 = vunpack.c.l.b16 %v520
      %v673 = vunpack.c.l.b16 %v521
      %v674 = vunpack.c.l.b16 %v522
      %v675 = vunpack.c.l.b16 %v523
      %v676 = vpack.c.b16 %v673, %v672
      %v677 = vpack.c.b16 %v675, %v674
      %v681 = vsel %vm574, %v666, 0
      %v684 = vsel %vm574, %v667, 0
      %686 = vmatprep.subr.bf16.mxu0 0
      %687 = vmatpush1.bf16.msra.mxu0 %v676
      %688 = vmatprep.subr.bf16.mxu0 0
      %689 = vmatpush1.bf16.msra.mxu0 %v677
      %690 = vmatprep.subr.bf16.mxu0 0
      %691 = vmatpush1.bf16.msra.mxu0 0
      %692 = vmatprep.subr.bf16.mxu0 0
      %693 = vmatpush1.bf16.msra.mxu0 0
      %694 = vmatprep.subr.bf16.mxu0 0
      %695 = vmatpush1.bf16.msra.mxu0 0
      %696 = vmatprep.subr.bf16.mxu0 0
      %697 = vmatpush1.bf16.msra.mxu0 0
      %698 = vmatprep.subr.bf16.mxu0 0
      %699 = vmatpush1.bf16.msra.mxu0 0
      %700 = vmatprep.subr.bf16.mxu0 0
      %701 = vmatpush1.bf16.msra.mxu0 0
      %702 = vmatprep.subr.bf16.mxu0 0
      %703 = vmatpush1.bf16.msra.mxu0 0
      %704 = vmatprep.subr.bf16.mxu0 0
      %705 = vmatpush1.bf16.msra.mxu0 0
      %706 = vmatprep.subr.bf16.mxu0 0
      %707 = vmatpush1.bf16.msra.mxu0 0
      %708 = vmatprep.subr.bf16.mxu0 0
      %709 = vmatpush1.bf16.msra.mxu0 0
      %710 = vmatprep.subr.bf16.mxu0 0
      %711 = vmatpush1.bf16.msra.mxu0 0
      %712 = vmatprep.subr.bf16.mxu0 0
      %713 = vmatpush1.bf16.msra.mxu0 0
      %714 = vmatprep.subr.bf16.mxu0 0
      %715 = vmatpush1.bf16.msra.mxu0 0
      %716 = vmatprep.subr.bf16.mxu0 0
      %717 = vmatpush1.bf16.msra.mxu0 0
      %718 = vmatprep.mubr.bf16.mxu0 0
      %719 = vmatmul.mubr.bf16.gmra.mrb[0].mxu0 %v681
      %v720 = vpop.f32.mrb[0].mxu0
      %v721 = vadd.f32 %v641, %v720
      %v722 = vpop.f32.mrb[0].mxu0
      %v723 = vpop.f32.mrb[0].mxu0
      %v724 = vadd.f32 %v646, %v723
      %v725 = vpop.f32.mrb[0].mxu0
      %726 = vmatprep.mubr.bf16.mxu0 0
      %727 = vmatmul.mubr.bf16.gmra.mrb[0].mxu0 %v684
      %v728 = vpop.f32.mrb[0].mxu0
      %v729 = vadd.f32 %v651, %v728
      %v730 = vpop.f32.mrb[0].mxu0
      %v731 = vpop.f32.mrb[0].mxu0
      %v732 = vadd.f32 %v656, %v731
      %v733 = vpop.f32.mrb[0].mxu0
      %734 = vdwg.mxu0
      %v735 = vld [vmem:[%s6] sm:$0xf]
      %v736 = vld [vmem:[%s6 + $0x4] sm:$0xf]
      %v737 = vld [vmem:[%s6 + $0x8] sm:$0xf]
      %v738 = vld [vmem:[%s6 + $0xc] sm:$0xf]
      %v739 = vld [vmem:[%s7] sm:$0xff]
      %v740 = vld [vmem:[%s7 + $0x8] sm:$0xff]
      %v741 = vld [vmem:[%s7 + $0x10] sm:$0xff]
      %v742 = vld [vmem:[%s7 + $0x18] sm:$0xff]
      %744 = vset.pattern.permute.xlu0 0
      %745 = vperm.xlu0 %744, %v739
      %v746 = vpop.permute.xlu0 %745
      %749 = vset.pattern.permute.xlu0 0
      %750 = vperm.xlu0 %749, %v740
      %v751 = vpop.permute.xlu0 %750
      %754 = vset.pattern.permute.xlu0 0
      %755 = vperm.xlu0 %754, %v741
      %v756 = vpop.permute.xlu0 %755
      %759 = vset.pattern.permute.xlu0 0
      %760 = vperm.xlu0 %759, %v742
      %v761 = vpop.permute.xlu0 %760
      %v767 = vunpack.c.l.b16 %v735
      %v768 = vunpack.c.l.b16 %v736
      %v769 = vunpack.c.l.b16 %v737
      %v770 = vunpack.c.l.b16 %v738
      %v771 = vpack.c.b16 %v768, %v767
      %v772 = vpack.c.b16 %v770, %v769
      %v774 = vsel %vm574, %v771, 0
      %v777 = vsel %vm574, %v772, 0
      %779 = vmatprep.subr.bf16.mxu0 0
      %780 = vmatpush1.bf16.msra.mxu0 %v676
      %781 = vmatprep.subr.bf16.mxu0 0
      %782 = vmatpush1.bf16.msra.mxu0 %v677
      %783 = vmatprep.subr.bf16.mxu0 0
      %784 = vmatpush1.bf16.msra.mxu0 0
      %785 = vmatprep.subr.bf16.mxu0 0
      %786 = vmatpush1.bf16.msra.mxu0 0
      %787 = vmatprep.subr.bf16.mxu0 0
      %788 = vmatpush1.bf16.msra.mxu0 0
      %789 = vmatprep.subr.bf16.mxu0 0
      %790 = vmatpush1.bf16.msra.mxu0 0
      %791 = vmatprep.subr.bf16.mxu0 0
      %792 = vmatpush1.bf16.msra.mxu0 0
      %793 = vmatprep.subr.bf16.mxu0 0
      %794 = vmatpush1.bf16.msra.mxu0 0
      %795 = vmatprep.subr.bf16.mxu0 0
      %796 = vmatpush1.bf16.msra.mxu0 0
      %797 = vmatprep.subr.bf16.mxu0 0
      %798 = vmatpush1.bf16.msra.mxu0 0
      %799 = vmatprep.subr.bf16.mxu0 0
      %800 = vmatpush1.bf16.msra.mxu0 0
      %801 = vmatprep.subr.bf16.mxu0 0
      %802 = vmatpush1.bf16.msra.mxu0 0
      %803 = vmatprep.subr.bf16.mxu0 0
      %804 = vmatpush1.bf16.msra.mxu0 0
      %805 = vmatprep.subr.bf16.mxu0 0
      %806 = vmatpush1.bf16.msra.mxu0 0
      %807 = vmatprep.subr.bf16.mxu0 0
      %808 = vmatpush1.bf16.msra.mxu0 0
      %809 = vmatprep.subr.bf16.mxu0 0
      %810 = vmatpush1.bf16.msra.mxu0 0
      %811 = vmatprep.mubr.bf16.mxu0 0
      %812 = vmatmul.mubr.bf16.gmra.mrb[0].mxu0 %v774
      %v813 = vpop.f32.mrb[0].mxu0
      %v814 = vadd.f32 %v746, %v813
      %v815 = vpop.f32.mrb[0].mxu0
      %v816 = vpop.f32.mrb[0].mxu0
      %v817 = vadd.f32 %v751, %v816
      %v818 = vpop.f32.mrb[0].mxu0
      %819 = vmatprep.mubr.bf16.mxu0 0
      %820 = vmatmul.mubr.bf16.gmra.mrb[0].mxu0 %v777
      %v821 = vpop.f32.mrb[0].mxu0
      %v822 = vadd.f32 %v756, %v821
      %v823 = vpop.f32.mrb[0].mxu0
      %v824 = vpop.f32.mrb[0].mxu0
      %v825 = vadd.f32 %v761, %v824
      %v826 = vpop.f32.mrb[0].mxu0
      %827 = vdwg.mxu0
      %v828 = vpack.c.bf16 %v616, %v616
      %v829 = vpack.c.bf16 %v721, %v721
      %v830 = vpack.c.bf16 %v814, %v814
      %831 = vxpose.xlu0.c.b16.start [1/8] %v828, 128
      %832 = vxpose.xlu0.c.b16.cont [2/8] 0, 128
      %833 = vxpose.xlu0.c.b16.cont [3/8] 0, 128
      %834 = vxpose.xlu0.c.b16.cont [4/8] 0, 128
      %835 = vxpose.xlu0.c.b16.cont [5/8] 0, 128
      %836 = vxpose.xlu0.c.b16.cont [6/8] 0, 128
      %837 = vxpose.xlu0.c.b16.cont [7/8] 0, 128
      %838 = vxpose.xlu0.c.b16.end [8/8] 0, 128
      %v839 = vpop.trf.xlu0
      %v840 = vpop.trf.xlu0
      %v841 = vpop.trf.xlu0
      %v842 = vpop.trf.xlu0
      %v843 = vpop.trf.xlu0
      %v844 = vpop.trf.xlu0
      %v845 = vpop.trf.xlu0
      %v846 = vpop.trf.xlu0
      %vm847 = vcmask 64512
      %v849 = vsel %vm847, %v839, 0
      %vm851 = vcmask 1043456
      %v853 = vsel %vm851, %v829, 0
      %855 = vmatprep.subr.bf16.mxu0 0
      %856 = vmatpush1.bf16.msra.mxu0 %v853
      %857 = vmatprep.subr.bf16.mxu0 0
      %858 = vmatpush1.bf16.msra.mxu0 0
      %859 = vmatprep.subr.bf16.mxu0 0
      %860 = vmatpush1.bf16.msra.mxu0 0
      %861 = vmatprep.subr.bf16.mxu0 0
      %862 = vmatpush1.bf16.msra.mxu0 0
      %863 = vmatprep.subr.bf16.mxu0 0
      %864 = vmatpush1.bf16.msra.mxu0 0
      %865 = vmatprep.subr.bf16.mxu0 0
      %866 = vmatpush1.bf16.msra.mxu0 0
      %867 = vmatprep.subr.bf16.mxu0 0
      %868 = vmatpush1.bf16.msra.mxu0 0
      %869 = vmatprep.subr.bf16.mxu0 0
      %870 = vmatpush1.bf16.msra.mxu0 0
      %871 = vmatprep.subr.bf16.mxu0 0
      %872 = vmatpush1.bf16.msra.mxu0 0
      %873 = vmatprep.subr.bf16.mxu0 0
      %874 = vmatpush1.bf16.msra.mxu0 0
      %875 = vmatprep.subr.bf16.mxu0 0
      %876 = vmatpush1.bf16.msra.mxu0 0
      %877 = vmatprep.subr.bf16.mxu0 0
      %878 = vmatpush1.bf16.msra.mxu0 0
      %879 = vmatprep.subr.bf16.mxu0 0
      %880 = vmatpush1.bf16.msra.mxu0 0
      %881 = vmatprep.subr.bf16.mxu0 0
      %882 = vmatpush1.bf16.msra.mxu0 0
      %883 = vmatprep.subr.bf16.mxu0 0
      %884 = vmatpush1.bf16.msra.mxu0 0
      %885 = vmatprep.subr.bf16.mxu0 0
      %886 = vmatpush1.bf16.msra.mxu0 0
      %887 = vmatprep.mubr.bf16.mxu0 0
      %888 = vmatmul.mubr.bf16.gmra.mrb[0].mxu0 %v849
      %v889 = vpop.f32.mrb[0].mxu0
      %v890 = vadd.f32 0.0, %v889
      %v891 = vpop.f32.mrb[0].mxu0
      %v892 = vpop.f32.mrb[0].mxu0
      %v893 = vadd.f32 0.0, %v892
      %v894 = vpop.f32.mrb[0].mxu0
      %895 = vdwg.mxu0
      %vm896 = vcmask 195584
      %v897 = vsel %vm896, %v890, -inf
      %898 = vmax.xlane.f32.xlu0 %v897
      %v899 = vpop.xlane.xlu0 %898
      %v900 = vsel %vm896, %v893, -inf
      %901 = vmax.xlane.f32.xlu0 %v900
      %v902 = vpop.xlane.xlu0 %901
      %v903 = vsub.f32 %v890, %v899
      %v904 = vsub.f32 %v893, %v902
      %v905 = vmul.f32 %v903, 1.442695
      %v906 = vpow.pop %v905
      %v907 = vmul.f32 %v904, 1.442695
      %v908 = vpow.pop %v907
      %v909 = vsel %vm896, %v906, 0.0
      %910 = vadd.xlane.f32.xlu0 %v909
      %v911 = vpop.xlane.xlu0 %910
      %v912 = vsel %vm896, %v908, 0.0
      %913 = vadd.xlane.f32.xlu0 %v912
      %v914 = vpop.xlane.xlu0 %913
      %v915 = vrcp.pop %v911
      %v916 = vrcp.pop %v914
      %v917 = vmul.f32 %v906, %v915
      %v918 = vmul.f32 %v908, %v916
      %v919 = vpack.c.bf16 %v918, %v917
      %v921 = vsel %vm896, %v830, 0
      %v924 = vsel %vm896, %v919, 0
      %926 = vmatprep.subr.bf16.mxu0 0
      %927 = vmatpush1.bf16.xpose.msra.mxu0 %v924
      %928 = vmatprep.subr.bf16.mxu0 0
      %929 = vmatpush1.bf16.xpose.msra.mxu0 0
      %930 = vmatprep.subr.bf16.mxu0 0
      %931 = vmatpush1.bf16.xpose.msra.mxu0 0
      %932 = vmatprep.subr.bf16.mxu0 0
      %933 = vmatpush1.bf16.xpose.msra.mxu0 0
      %934 = vmatprep.subr.bf16.mxu0 0
      %935 = vmatpush1.bf16.xpose.msra.mxu0 0
      %936 = vmatprep.subr.bf16.mxu0 0
      %937 = vmatpush1.bf16.xpose.msra.mxu0 0
      %938 = vmatprep.subr.bf16.mxu0 0
      %939 = vmatpush1.bf16.xpose.msra.mxu0 0
      %940 = vmatprep.subr.bf16.mxu0 0
      %941 = vmatpush1.bf16.xpose.msra.mxu0 0
      %942 = vmatprep.subr.bf16.mxu0 0
      %943 = vmatpush1.bf16.xpose.msra.mxu0 0
      %944 = vmatprep.subr.bf16.mxu0 0
      %945 = vmatpush1.bf16.xpose.msra.mxu0 0
      %946 = vmatprep.subr.bf16.mxu0 0
      %947 = vmatpush1.bf16.xpose.msra.mxu0 0
      %948 = vmatprep.subr.bf16.mxu0 0
      %949 = vmatpush1.bf16.xpose.msra.mxu0 0
      %950 = vmatprep.subr.bf16.mxu0 0
      %951 = vmatpush1.bf16.xpose.msra.mxu0 0
      %952 = vmatprep.subr.bf16.mxu0 0
      %953 = vmatpush1.bf16.xpose.msra.mxu0 0
      %954 = vmatprep.subr.bf16.mxu0 0
      %955 = vmatpush1.bf16.xpose.msra.mxu0 0
      %956 = vmatprep.subr.bf16.mxu0 0
      %957 = vmatpush1.bf16.xpose.msra.mxu0 0
      %958 = vmatprep.mubr.bf16.mxu0 0
      %959 = vmatmul.mubr.bf16.gmra.mrb[0].mxu0 %v921
      %v960 = vpop.f32.mrb[0].mxu0
      %v961 = vadd.f32 0.0, %v960
      %v962 = vpop.f32.mrb[0].mxu0
      %v963 = vpop.f32.mrb[0].mxu0
      %v964 = vpop.f32.mrb[0].mxu0
      %965 = vdwg.mxu0
      %vm966 = vcmask 130048
      %967 = vst.msk [vmem:[#allocation2] sm:$0xff] %vm966, %v961
      %v968 = vpack.c.bf16 %v619, %v619
      %v969 = vpack.c.bf16 %v724, %v724
      %v970 = vpack.c.bf16 %v817, %v817
      %971 = vxpose.xlu0.c.b16.start [1/8] %v968, 128
      %972 = vxpose.xlu0.c.b16.cont [2/8] 0, 128
      %973 = vxpose.xlu0.c.b16.cont [3/8] 0, 128
      %974 = vxpose.xlu0.c.b16.cont [4/8] 0, 128
      %975 = vxpose.xlu0.c.b16.cont [5/8] 0, 128
      %976 = vxpose.xlu0.c.b16.cont [6/8] 0, 128
      %977 = vxpose.xlu0.c.b16.cont [7/8] 0, 128
      %978 = vxpose.xlu0.c.b16.end [8/8] 0, 128
      %v979 = vpop.trf.xlu0
      %v980 = vpop.trf.xlu0
      %v981 = vpop.trf.xlu0
      %v982 = vpop.trf.xlu0
      %v983 = vpop.trf.xlu0
      %v984 = vpop.trf.xlu0
      %v985 = vpop.trf.xlu0
      %v986 = vpop.trf.xlu0
      %v988 = vsel %vm847, %v979, 0
      %v991 = vsel %vm851, %v969, 0
      %993 = vmatprep.subr.bf16.mxu0 0
      %994 = vmatpush1.bf16.msra.mxu0 %v991
      %995 = vmatprep.subr.bf16.mxu0 0
      %996 = vmatpush1.bf16.msra.mxu0 0
      %997 = vmatprep.subr.bf16.mxu0 0
      %998 = vmatpush1.bf16.msra.mxu0 0
      %999 = vmatprep.subr.bf16.mxu0 0
      %1000 = vmatpush1.bf16.msra.mxu0 0
      %1001 = vmatprep.subr.bf16.mxu0 0
      %1002 = vmatpush1.bf16.msra.mxu0 0
      %1003 = vmatprep.subr.bf16.mxu0 0
      %1004 = vmatpush1.bf16.msra.mxu0 0
      %1005 = vmatprep.subr.bf16.mxu0 0
      %1006 = vmatpush1.bf16.msra.mxu0 0
      %1007 = vmatprep.subr.bf16.mxu0 0
      %1008 = vmatpush1.bf16.msra.mxu0 0
      %1009 = vmatprep.subr.bf16.mxu0 0
      %1010 = vmatpush1.bf16.msra.mxu0 0
      %1011 = vmatprep.subr.bf16.mxu0 0
      %1012 = vmatpush1.bf16.msra.mxu0 0
      %1013 = vmatprep.subr.bf16.mxu0 0
      %1014 = vmatpush1.bf16.msra.mxu0 0
      %1015 = vmatprep.subr.bf16.mxu0 0
      %1016 = vmatpush1.bf16.msra.mxu0 0
      %1017 = vmatprep.subr.bf16.mxu0 0
      %1018 = vmatpush1.bf16.msra.mxu0 0
      %1019 = vmatprep.subr.bf16.mxu0 0
      %1020 = vmatpush1.bf16.msra.mxu0 0
      %1021 = vmatprep.subr.bf16.mxu0 0
      %1022 = vmatpush1.bf16.msra.mxu0 0
      %1023 = vmatprep.subr.bf16.mxu0 0
      %1024 = vmatpush1.bf16.msra.mxu0 0
      %1025 = vmatprep.mubr.bf16.mxu0 0
      %1026 = vmatmul.mubr.bf16.gmra.mrb[0].mxu0 %v988
      %v1027 = vpop.f32.mrb[0].mxu0
      %v1028 = vadd.f32 0.0, %v1027
      %v1029 = vpop.f32.mrb[0].mxu0
      %v1030 = vpop.f32.mrb[0].mxu0
      %v1031 = vadd.f32 0.0, %v1030
      %v1032 = vpop.f32.mrb[0].mxu0
      %1033 = vdwg.mxu0
      %v1034 = vsel %vm896, %v1028, -inf
      %1035 = vmax.xlane.f32.xlu0 %v1034
      %v1036 = vpop.xlane.xlu0 %1035
      %v1037 = vsel %vm896, %v1031, -inf
      %1038 = vmax.xlane.f32.xlu0 %v1037
      %v1039 = vpop.xlane.xlu0 %1038
      %v1040 = vsub.f32 %v1028, %v1036
      %v1041 = vsub.f32 %v1031, %v1039
      %v1042 = vmul.f32 %v1040, 1.442695
      %v1043 = vpow.pop %v1042
      %v1044 = vmul.f32 %v1041, 1.442695
      %v1045 = vpow.pop %v1044
      %v1046 = vsel %vm896, %v1043, 0.0
      %1047 = vadd.xlane.f32.xlu0 %v1046
      %v1048 = vpop.xlane.xlu0 %1047
      %v1049 = vsel %vm896, %v1045, 0.0
      %1050 = vadd.xlane.f32.xlu0 %v1049
      %v1051 = vpop.xlane.xlu0 %1050
      %v1052 = vrcp.pop %v1048
      %v1053 = vrcp.pop %v1051
      %v1054 = vmul.f32 %v1043, %v1052
      %v1055 = vmul.f32 %v1045, %v1053
      %v1056 = vpack.c.bf16 %v1055, %v1054
      %v1058 = vsel %vm896, %v970, 0
      %v1061 = vsel %vm896, %v1056, 0
      %1063 = vmatprep.subr.bf16.mxu0 0
      %1064 = vmatpush1.bf16.xpose.msra.mxu0 %v1061
      %1065 = vmatprep.subr.bf16.mxu0 0
      %1066 = vmatpush1.bf16.xpose.msra.mxu0 0
      %1067 = vmatprep.subr.bf16.mxu0 0
      %1068 = vmatpush1.bf16.xpose.msra.mxu0 0
      %1069 = vmatprep.subr.bf16.mxu0 0
      %1070 = vmatpush1.bf16.xpose.msra.mxu0 0
      %1071 = vmatprep.subr.bf16.mxu0 0
      %1072 = vmatpush1.bf16.xpose.msra.mxu0 0
      %1073 = vmatprep.subr.bf16.mxu0 0
      %1074 = vmatpush1.bf16.xpose.msra.mxu0 0
      %1075 = vmatprep.subr.bf16.mxu0 0
      %1076 = vmatpush1.bf16.xpose.msra.mxu0 0
      %1077 = vmatprep.subr.bf16.mxu0 0
      %1078 = vmatpush1.bf16.xpose.msra.mxu0 0
      %1079 = vmatprep.subr.bf16.mxu0 0
      %1080 = vmatpush1.bf16.xpose.msra.mxu0 0
      %1081 = vmatprep.subr.bf16.mxu0 0
      %1082 = vmatpush1.bf16.xpose.msra.mxu0 0
      %1083 = vmatprep.subr.bf16.mxu0 0
      %1084 = vmatpush1.bf16.xpose.msra.mxu0 0
      %1085 = vmatprep.subr.bf16.mxu0 0
      %1086 = vmatpush1.bf16.xpose.msra.mxu0 0
      %1087 = vmatprep.subr.bf16.mxu0 0
      %1088 = vmatpush1.bf16.xpose.msra.mxu0 0
      %1089 = vmatprep.subr.bf16.mxu0 0
      %1090 = vmatpush1.bf16.xpose.msra.mxu0 0
      %1091 = vmatprep.subr.bf16.mxu0 0
      %1092 = vmatpush1.bf16.xpose.msra.mxu0 0
      %1093 = vmatprep.subr.bf16.mxu0 0
      %1094 = vmatpush1.bf16.xpose.msra.mxu0 0
      %1095 = vmatprep.mubr.bf16.mxu0 0
      %1096 = vmatmul.mubr.bf16.gmra.mrb[0].mxu0 %v1058
      %v1097 = vpop.f32.mrb[0].mxu0
      %v1098 = vadd.f32 0.0, %v1097
      %v1099 = vpop.f32.mrb[0].mxu0
      %v1100 = vpop.f32.mrb[0].mxu0
      %v1101 = vpop.f32.mrb[0].mxu0
      %1102 = vdwg.mxu0
      %1103 = vst.msk [vmem:[#allocation2 + $0x8] sm:$0xff] %vm966, %v1098
      %v1104 = vpack.c.bf16 %v624, %v624
      %v1105 = vpack.c.bf16 %v729, %v729
      %v1106 = vpack.c.bf16 %v822, %v822
      %1107 = vxpose.xlu0.c.b16.start [1/8] %v1104, 128
      %1108 = vxpose.xlu0.c.b16.cont [2/8] 0, 128
      %1109 = vxpose.xlu0.c.b16.cont [3/8] 0, 128
      %1110 = vxpose.xlu0.c.b16.cont [4/8] 0, 128
      %1111 = vxpose.xlu0.c.b16.cont [5/8] 0, 128
      %1112 = vxpose.xlu0.c.b16.cont [6/8] 0, 128
      %1113 = vxpose.xlu0.c.b16.cont [7/8] 0, 128
      %1114 = vxpose.xlu0.c.b16.end [8/8] 0, 128
      %v1115 = vpop.trf.xlu0
      %v1116 = vpop.trf.xlu0
      %v1117 = vpop.trf.xlu0
      %v1118 = vpop.trf.xlu0
      %v1119 = vpop.trf.xlu0
      %v1120 = vpop.trf.xlu0
      %v1121 = vpop.trf.xlu0
      %v1122 = vpop.trf.xlu0
      %v1124 = vsel %vm847, %v1115, 0
      %v1127 = vsel %vm851, %v1105, 0
      %1129 = vmatprep.subr.bf16.mxu0 0
      %1130 = vmatpush1.bf16.msra.mxu0 %v1127
      %1131 = vmatprep.subr.bf16.mxu0 0
      %1132 = vmatpush1.bf16.msra.mxu0 0
      %1133 = vmatprep.subr.bf16.mxu0 0
      %1134 = vmatpush1.bf16.msra.mxu0 0
      %1135 = vmatprep.subr.bf16.mxu0 0
      %1136 = vmatpush1.bf16.msra.mxu0 0
      %1137 = vmatprep.subr.bf16.mxu0 0
      %1138 = vmatpush1.bf16.msra.mxu0 0
      %1139 = vmatprep.subr.bf16.mxu0 0
      %1140 = vmatpush1.bf16.msra.mxu0 0
      %1141 = vmatprep.subr.bf16.mxu0 0
      %1142 = vmatpush1.bf16.msra.mxu0 0
      %1143 = vmatprep.subr.bf16.mxu0 0
      %1144 = vmatpush1.bf16.msra.mxu0 0
      %1145 = vmatprep.subr.bf16.mxu0 0
      %1146 = vmatpush1.bf16.msra.mxu0 0
      %1147 = vmatprep.subr.bf16.mxu0 0
      %1148 = vmatpush1.bf16.msra.mxu0 0
      %1149 = vmatprep.subr.bf16.mxu0 0
      %1150 = vmatpush1.bf16.msra.mxu0 0
      %1151 = vmatprep.subr.bf16.mxu0 0
      %1152 = vmatpush1.bf16.msra.mxu0 0
      %1153 = vmatprep.subr.bf16.mxu0 0
      %1154 = vmatpush1.bf16.msra.mxu0 0
      %1155 = vmatprep.subr.bf16.mxu0 0
      %1156 = vmatpush1.bf16.msra.mxu0 0
      %1157 = vmatprep.subr.bf16.mxu0 0
      %1158 = vmatpush1.bf16.msra.mxu0 0
      %1159 = vmatprep.subr.bf16.mxu0 0
      %1160 = vmatpush1.bf16.msra.mxu0 0
      %1161 = vmatprep.mubr.bf16.mxu0 0
      %1162 = vmatmul.mubr.bf16.gmra.mrb[0].mxu0 %v1124
      %v1163 = vpop.f32.mrb[0].mxu0
      %v1164 = vadd.f32 0.0, %v1163
      %v1165 = vpop.f32.mrb[0].mxu0
      %v1166 = vpop.f32.mrb[0].mxu0
      %v1167 = vadd.f32 0.0, %v1166
      %v1168 = vpop.f32.mrb[0].mxu0
      %1169 = vdwg.mxu0
      %v1170 = vsel %vm896, %v1164, -inf
      %1171 = vmax.xlane.f32.xlu0 %v1170
      %v1172 = vpop.xlane.xlu0 %1171
      %v1173 = vsel %vm896, %v1167, -inf
      %1174 = vmax.xlane.f32.xlu0 %v1173
      %v1175 = vpop.xlane.xlu0 %1174
      %v1176 = vsub.f32 %v1164, %v1172
      %v1177 = vsub.f32 %v1167, %v1175
      %v1178 = vmul.f32 %v1176, 1.442695
      %v1179 = vpow.pop %v1178
      %v1180 = vmul.f32 %v1177, 1.442695
      %v1181 = vpow.pop %v1180
      %v1182 = vsel %vm896, %v1179, 0.0
      %1183 = vadd.xlane.f32.xlu0 %v1182
      %v1184 = vpop.xlane.xlu0 %1183
      %v1185 = vsel %vm896, %v1181, 0.0
      %1186 = vadd.xlane.f32.xlu0 %v1185
      %v1187 = vpop.xlane.xlu0 %1186
      %v1188 = vrcp.pop %v1184
      %v1189 = vrcp.pop %v1187
      %v1190 = vmul.f32 %v1179, %v1188
      %v1191 = vmul.f32 %v1181, %v1189
      %v1192 = vpack.c.bf16 %v1191, %v1190
      %v1194 = vsel %vm896, %v1106, 0
      %v1197 = vsel %vm896, %v1192, 0
      %1199 = vmatprep.subr.bf16.mxu0 0
      %1200 = vmatpush1.bf16.xpose.msra.mxu0 %v1197
      %1201 = vmatprep.subr.bf16.mxu0 0
      %1202 = vmatpush1.bf16.xpose.msra.mxu0 0
      %1203 = vmatprep.subr.bf16.mxu0 0
      %1204 = vmatpush1.bf16.xpose.msra.mxu0 0
      %1205 = vmatprep.subr.bf16.mxu0 0
      %1206 = vmatpush1.bf16.xpose.msra.mxu0 0
      %1207 = vmatprep.subr.bf16.mxu0 0
      %1208 = vmatpush1.bf16.xpose.msra.mxu0 0
      %1209 = vmatprep.subr.bf16.mxu0 0
      %1210 = vmatpush1.bf16.xpose.msra.mxu0 0
      %1211 = vmatprep.subr.bf16.mxu0 0
      %1212 = vmatpush1.bf16.xpose.msra.mxu0 0
      %1213 = vmatprep.subr.bf16.mxu0 0
      %1214 = vmatpush1.bf16.xpose.msra.mxu0 0
      %1215 = vmatprep.subr.bf16.mxu0 0
      %1216 = vmatpush1.bf16.xpose.msra.mxu0 0
      %1217 = vmatprep.subr.bf16.mxu0 0
      %1218 = vmatpush1.bf16.xpose.msra.mxu0 0
      %1219 = vmatprep.subr.bf16.mxu0 0
      %1220 = vmatpush1.bf16.xpose.msra.mxu0 0
      %1221 = vmatprep.subr.bf16.mxu0 0
      %1222 = vmatpush1.bf16.xpose.msra.mxu0 0
      %1223 = vmatprep.subr.bf16.mxu0 0
      %1224 = vmatpush1.bf16.xpose.msra.mxu0 0
      %1225 = vmatprep.subr.bf16.mxu0 0
      %1226 = vmatpush1.bf16.xpose.msra.mxu0 0
      %1227 = vmatprep.subr.bf16.mxu0 0
      %1228 = vmatpush1.bf16.xpose.msra.mxu0 0
      %1229 = vmatprep.subr.bf16.mxu0 0
      %1230 = vmatpush1.bf16.xpose.msra.mxu0 0
      %1231 = vmatprep.mubr.bf16.mxu0 0
      %1232 = vmatmul.mubr.bf16.gmra.mrb[0].mxu0 %v1194
      %v1233 = vpop.f32.mrb[0].mxu0
      %v1234 = vadd.f32 0.0, %v1233
      %v1235 = vpop.f32.mrb[0].mxu0
      %v1236 = vpop.f32.mrb[0].mxu0
      %v1237 = vpop.f32.mrb[0].mxu0
      %1238 = vdwg.mxu0
      %1239 = vst.msk [vmem:[#allocation2 + $0x10] sm:$0xff] %vm966, %v1234
      %v1240 = vpack.c.bf16 %v627, %v627
      %v1241 = vpack.c.bf16 %v732, %v732
      %v1242 = vpack.c.bf16 %v825, %v825
      %1243 = vxpose.xlu0.c.b16.start [1/8] %v1240, 128
      %1244 = vxpose.xlu0.c.b16.cont [2/8] 0, 128
      %1245 = vxpose.xlu0.c.b16.cont [3/8] 0, 128
      %1246 = vxpose.xlu0.c.b16.cont [4/8] 0, 128
      %1247 = vxpose.xlu0.c.b16.cont [5/8] 0, 128
      %1248 = vxpose.xlu0.c.b16.cont [6/8] 0, 128
      %1249 = vxpose.xlu0.c.b16.cont [7/8] 0, 128
      %1250 = vxpose.xlu0.c.b16.end [8/8] 0, 128
      %v1251 = vpop.trf.xlu0
      %v1252 = vpop.trf.xlu0
      %v1253 = vpop.trf.xlu0
      %v1254 = vpop.trf.xlu0
      %v1255 = vpop.trf.xlu0
      %v1256 = vpop.trf.xlu0
      %v1257 = vpop.trf.xlu0
      %v1258 = vpop.trf.xlu0
      %v1260 = vsel %vm847, %v1251, 0
      %v1263 = vsel %vm851, %v1241, 0
      %1265 = vmatprep.subr.bf16.mxu0 0
      %1266 = vmatpush1.bf16.msra.mxu0 %v1263
      %1267 = vmatprep.subr.bf16.mxu0 0
      %1268 = vmatpush1.bf16.msra.mxu0 0
      %1269 = vmatprep.subr.bf16.mxu0 0
      %1270 = vmatpush1.bf16.msra.mxu0 0
      %1271 = vmatprep.subr.bf16.mxu0 0
      %1272 = vmatpush1.bf16.msra.mxu0 0
      %1273 = vmatprep.subr.bf16.mxu0 0
      %1274 = vmatpush1.bf16.msra.mxu0 0
      %1275 = vmatprep.subr.bf16.mxu0 0
      %1276 = vmatpush1.bf16.msra.mxu0 0
      %1277 = vmatprep.subr.bf16.mxu0 0
      %1278 = vmatpush1.bf16.msra.mxu0 0
      %1279 = vmatprep.subr.bf16.mxu0 0
      %1280 = vmatpush1.bf16.msra.mxu0 0
      %1281 = vmatprep.subr.bf16.mxu0 0
      %1282 = vmatpush1.bf16.msra.mxu0 0
      %1283 = vmatprep.subr.bf16.mxu0 0
      %1284 = vmatpush1.bf16.msra.mxu0 0
      %1285 = vmatprep.subr.bf16.mxu0 0
      %1286 = vmatpush1.bf16.msra.mxu0 0
      %1287 = vmatprep.subr.bf16.mxu0 0
      %1288 = vmatpush1.bf16.msra.mxu0 0
      %1289 = vmatprep.subr.bf16.mxu0 0
      %1290 = vmatpush1.bf16.msra.mxu0 0
      %1291 = vmatprep.subr.bf16.mxu0 0
      %1292 = vmatpush1.bf16.msra.mxu0 0
      %1293 = vmatprep.subr.bf16.mxu0 0
      %1294 = vmatpush1.bf16.msra.mxu0 0
      %1295 = vmatprep.subr.bf16.mxu0 0
      %1296 = vmatpush1.bf16.msra.mxu0 0
      %1297 = vmatprep.mubr.bf16.mxu0 0
      %1298 = vmatmul.mubr.bf16.gmra.mrb[0].mxu0 %v1260
      %v1299 = vpop.f32.mrb[0].mxu0
      %v1300 = vadd.f32 0.0, %v1299
      %v1301 = vpop.f32.mrb[0].mxu0
      %v1302 = vpop.f32.mrb[0].mxu0
      %v1303 = vadd.f32 0.0, %v1302
      %v1304 = vpop.f32.mrb[0].mxu0
      %1305 = vdwg.mxu0
      %v1306 = vsel %vm896, %v1300, -inf
      %1307 = vmax.xlane.f32.xlu0 %v1306
      %v1308 = vpop.xlane.xlu0 %1307
      %v1309 = vsel %vm896, %v1303, -inf
      %1310 = vmax.xlane.f32.xlu0 %v1309
      %v1311 = vpop.xlane.xlu0 %1310
      %v1312 = vsub.f32 %v1300, %v1308
      %v1313 = vsub.f32 %v1303, %v1311
      %v1314 = vmul.f32 %v1312, 1.442695
      %v1315 = vpow.pop %v1314
      %v1316 = vmul.f32 %v1313, 1.442695
      %v1317 = vpow.pop %v1316
      %v1318 = vsel %vm896, %v1315, 0.0
      %1319 = vadd.xlane.f32.xlu0 %v1318
      %v1320 = vpop.xlane.xlu0 %1319
      %v1321 = vsel %vm896, %v1317, 0.0
      %1322 = vadd.xlane.f32.xlu0 %v1321
      %v1323 = vpop.xlane.xlu0 %1322
      %v1324 = vrcp.pop %v1320
      %v1325 = vrcp.pop %v1323
      %v1326 = vmul.f32 %v1315, %v1324
      %v1327 = vmul.f32 %v1317, %v1325
      %v1328 = vpack.c.bf16 %v1327, %v1326
      %v1330 = vsel %vm896, %v1242, 0
      %v1333 = vsel %vm896, %v1328, 0
      %1335 = vmatprep.subr.bf16.mxu0 0
      %1336 = vmatpush1.bf16.xpose.msra.mxu0 %v1333
      %1337 = vmatprep.subr.bf16.mxu0 0
      %1338 = vmatpush1.bf16.xpose.msra.mxu0 0
      %1339 = vmatprep.subr.bf16.mxu0 0
      %1340 = vmatpush1.bf16.xpose.msra.mxu0 0
      %1341 = vmatprep.subr.bf16.mxu0 0
      %1342 = vmatpush1.bf16.xpose.msra.mxu0 0
      %1343 = vmatprep.subr.bf16.mxu0 0
      %1344 = vmatpush1.bf16.xpose.msra.mxu0 0
      %1345 = vmatprep.subr.bf16.mxu0 0
      %1346 = vmatpush1.bf16.xpose.msra.mxu0 0
      %1347 = vmatprep.subr.bf16.mxu0 0
      %1348 = vmatpush1.bf16.xpose.msra.mxu0 0
      %1349 = vmatprep.subr.bf16.mxu0 0
      %1350 = vmatpush1.bf16.xpose.msra.mxu0 0
      %1351 = vmatprep.subr.bf16.mxu0 0
      %1352 = vmatpush1.bf16.xpose.msra.mxu0 0
      %1353 = vmatprep.subr.bf16.mxu0 0
      %1354 = vmatpush1.bf16.xpose.msra.mxu0 0
      %1355 = vmatprep.subr.bf16.mxu0 0
      %1356 = vmatpush1.bf16.xpose.msra.mxu0 0
      %1357 = vmatprep.subr.bf16.mxu0 0
      %1358 = vmatpush1.bf16.xpose.msra.mxu0 0
      %1359 = vmatprep.subr.bf16.mxu0 0
      %1360 = vmatpush1.bf16.xpose.msra.mxu0 0
      %1361 = vmatprep.subr.bf16.mxu0 0
      %1362 = vmatpush1.bf16.xpose.msra.mxu0 0
      %1363 = vmatprep.subr.bf16.mxu0 0
      %1364 = vmatpush1.bf16.xpose.msra.mxu0 0
      %1365 = vmatprep.subr.bf16.mxu0 0
      %1366 = vmatpush1.bf16.xpose.msra.mxu0 0
      %1367 = vmatprep.mubr.bf16.mxu0 0
      %1368 = vmatmul.mubr.bf16.gmra.mrb[0].mxu0 %v1330
      %v1369 = vpop.f32.mrb[0].mxu0
      %v1370 = vadd.f32 0.0, %v1369
      %v1371 = vpop.f32.mrb[0].mxu0
      %v1372 = vpop.f32.mrb[0].mxu0
      %v1373 = vpop.f32.mrb[0].mxu0
      %1374 = vdwg.mxu0
      %1375 = vst.msk [vmem:[#allocation2 + $0x18] sm:$0xff] %vm966, %v1370
      %v1376 = vld [vmem:[#allocation2] sm:$0xff]
      %v1377 = vld [vmem:[#allocation2 + $0x8] sm:$0xff]
      %v1378 = vld [vmem:[#allocation2 + $0x10] sm:$0xff]
      %v1379 = vld [vmem:[#allocation2 + $0x18] sm:$0xff]
      %v1380 = vpack.c.bf16 %v1377, %v1376
      %v1381 = vpack.c.bf16 %v1379, %v1378
      %v1382 = vld [vmem:[%s8] sm:$0xf]
      %v1383 = vld [vmem:[%s8 + $0x4] sm:$0xf]
      %v1384 = vld [vmem:[%s8 + $0x8] sm:$0xf]
      %v1385 = vld [vmem:[%s8 + $0xc] sm:$0xf]
      %v1386 = vld [vmem:[%s9] sm:$0xff]
      %v1387 = vld [vmem:[%s9 + $0x8] sm:$0xff]
      %v1388 = vld [vmem:[%s9 + $0x10] sm:$0xff]
      %v1389 = vld [vmem:[%s9 + $0x18] sm:$0xff]
      %1391 = vset.pattern.permute.xlu0 0
      %1392 = vperm.xlu0 %1391, %v1386
      %v1393 = vpop.permute.xlu0 %1392
      %1396 = vset.pattern.permute.xlu0 0
      %1397 = vperm.xlu0 %1396, %v1387
      %v1398 = vpop.permute.xlu0 %1397
      %1401 = vset.pattern.permute.xlu0 0
      %1402 = vperm.xlu0 %1401, %v1388
      %v1403 = vpop.permute.xlu0 %1402
      %1406 = vset.pattern.permute.xlu0 0
      %1407 = vperm.xlu0 %1406, %v1389
      %v1408 = vpop.permute.xlu0 %1407
      %v1414 = vunpack.c.l.b16 %v1382
      %v1415 = vunpack.c.l.b16 %v1383
      %v1416 = vunpack.c.l.b16 %v1384
      %v1417 = vunpack.c.l.b16 %v1385
      %v1418 = vpack.c.b16 %v1415, %v1414
      %v1419 = vpack.c.b16 %v1417, %v1416
      %v1421 = vsel %vm574, %v1418, 0
      %v1424 = vsel %vm574, %v1419, 0
      %1426 = vmatprep.subr.bf16.mxu0 0
      %1427 = vmatpush1.bf16.msra.mxu0 %v1380
      %1428 = vmatprep.subr.bf16.mxu0 0
      %1429 = vmatpush1.bf16.msra.mxu0 %v1381
      %1430 = vmatprep.subr.bf16.mxu0 0
      %1431 = vmatpush1.bf16.msra.mxu0 0
      %1432 = vmatprep.subr.bf16.mxu0 0
      %1433 = vmatpush1.bf16.msra.mxu0 0
      %1434 = vmatprep.subr.bf16.mxu0 0
      %1435 = vmatpush1.bf16.msra.mxu0 0
      %1436 = vmatprep.subr.bf16.mxu0 0
      %1437 = vmatpush1.bf16.msra.mxu0 0
      %1438 = vmatprep.subr.bf16.mxu0 0
      %1439 = vmatpush1.bf16.msra.mxu0 0
      %1440 = vmatprep.subr.bf16.mxu0 0
      %1441 = vmatpush1.bf16.msra.mxu0 0
      %1442 = vmatprep.subr.bf16.mxu0 0
      %1443 = vmatpush1.bf16.msra.mxu0 0
      %1444 = vmatprep.subr.bf16.mxu0 0
      %1445 = vmatpush1.bf16.msra.mxu0 0
      %1446 = vmatprep.subr.bf16.mxu0 0
      %1447 = vmatpush1.bf16.msra.mxu0 0
      %1448 = vmatprep.subr.bf16.mxu0 0
      %1449 = vmatpush1.bf16.msra.mxu0 0
      %1450 = vmatprep.subr.bf16.mxu0 0
      %1451 = vmatpush1.bf16.msra.mxu0 0
      %1452 = vmatprep.subr.bf16.mxu0 0
      %1453 = vmatpush1.bf16.msra.mxu0 0
      %1454 = vmatprep.subr.bf16.mxu0 0
      %1455 = vmatpush1.bf16.msra.mxu0 0
      %1456 = vmatprep.subr.bf16.mxu0 0
      %1457 = vmatpush1.bf16.msra.mxu0 0
      %1458 = vmatprep.mubr.bf16.mxu0 0
      %1459 = vmatmul.mubr.bf16.gmra.mrb[0].mxu0 %v1421
      %v1460 = vpop.f32.mrb[0].mxu0
      %v1461 = vadd.f32 %v1393, %v1460
      %v1462 = vpop.f32.mrb[0].mxu0
      %v1463 = vpop.f32.mrb[0].mxu0
      %v1464 = vadd.f32 %v1398, %v1463
      %v1465 = vpop.f32.mrb[0].mxu0
      %1466 = vmatprep.mubr.bf16.mxu0 0
      %1467 = vmatmul.mubr.bf16.gmra.mrb[0].mxu0 %v1424
      %v1468 = vpop.f32.mrb[0].mxu0
      %v1469 = vadd.f32 %v1403, %v1468
      %v1470 = vpop.f32.mrb[0].mxu0
      %v1471 = vpop.f32.mrb[0].mxu0
      %v1472 = vadd.f32 %v1408, %v1471
      %v1473 = vpop.f32.mrb[0].mxu0
      %1474 = vdwg.mxu0
      %v1475 = vld [vmem:[%s10] sm:$0xf]
      %v1476 = vld [vmem:[%s10 + $0x4] sm:$0xf]
      %v1477 = vld [vmem:[%s10 + $0x8] sm:$0xf]
      %v1478 = vld [vmem:[%s10 + $0xc] sm:$0xf]
      %v1479 = vld [vmem:[%s10 + $0x10] sm:$0xf]
      %v1480 = vld [vmem:[%s10 + $0x14] sm:$0xf]
      %v1481 = vld [vmem:[%s10 + $0x18] sm:$0xf]
      %v1482 = vld [vmem:[%s10 + $0x1c] sm:$0xf]
      %v1483 = vld [vmem:[%s11] sm:$0xf]
      %v1484 = vld [vmem:[%s11 + $0x4] sm:$0xf]
      %v1485 = vld [vmem:[%s11 + $0x8] sm:$0xf]
      %v1486 = vld [vmem:[%s11 + $0xc] sm:$0xf]
      %v1487 = vld [vmem:[%s11 + $0x10] sm:$0xf]
      %v1488 = vld [vmem:[%s11 + $0x14] sm:$0xf]
      %v1489 = vld [vmem:[%s11 + $0x18] sm:$0xf]
      %v1490 = vld [vmem:[%s11 + $0x1c] sm:$0xf]
      %v1491 = vpack.c.bf16 %v1464, %v1461
      %v1492 = vpack.c.bf16 %v1472, %v1469
      %v1501 = vunpack.c.l.b16 %v1483
      %v1502 = vunpack.c.l.b16 %v1484
      %v1503 = vunpack.c.l.b16 %v1485
      %v1504 = vunpack.c.l.b16 %v1486
      %v1505 = vunpack.c.l.b16 %v1487
      %v1506 = vunpack.c.l.b16 %v1488
      %v1507 = vunpack.c.l.b16 %v1489
      %v1508 = vunpack.c.l.b16 %v1490
      %v1509 = vpack.c.b16 %v1502, %v1501
      %v1510 = vpack.c.b16 %v1504, %v1503
      %v1511 = vpack.c.b16 %v1506, %v1505
      %v1512 = vpack.c.b16 %v1508, %v1507
      %v1514 = vsel %vm574, %v1509, 0
      %v1517 = vsel %vm574, %v1510, 0
      %v1520 = vsel %vm574, %v1511, 0
      %v1523 = vsel %vm574, %v1512, 0
      %1525 = vmatprep.subr.bf16.mxu0 0
      %1526 = vmatpush1.bf16.msra.mxu0 %v1491
      %1527 = vmatprep.subr.bf16.mxu0 0
      %1528 = vmatpush1.bf16.msra.mxu0 %v1492
      %1529 = vmatprep.subr.bf16.mxu0 0
      %1530 = vmatpush1.bf16.msra.mxu0 0
      %1531 = vmatprep.subr.bf16.mxu0 0
      %1532 = vmatpush1.bf16.msra.mxu0 0
      %1533 = vmatprep.subr.bf16.mxu0 0
      %1534 = vmatpush1.bf16.msra.mxu0 0
      %1535 = vmatprep.subr.bf16.mxu0 0
      %1536 = vmatpush1.bf16.msra.mxu0 0
      %1537 = vmatprep.subr.bf16.mxu0 0
      %1538 = vmatpush1.bf16.msra.mxu0 0
      %1539 = vmatprep.subr.bf16.mxu0 0
      %1540 = vmatpush1.bf16.msra.mxu0 0
      %1541 = vmatprep.subr.bf16.mxu0 0
      %1542 = vmatpush1.bf16.msra.mxu0 0
      %1543 = vmatprep.subr.bf16.mxu0 0
      %1544 = vmatpush1.bf16.msra.mxu0 0
      %1545 = vmatprep.subr.bf16.mxu0 0
      %1546 = vmatpush1.bf16.msra.mxu0 0
      %1547 = vmatprep.subr.bf16.mxu0 0
      %1548 = vmatpush1.bf16.msra.mxu0 0
      %1549 = vmatprep.subr.bf16.mxu0 0
      %1550 = vmatpush1.bf16.msra.mxu0 0
      %1551 = vmatprep.subr.bf16.mxu0 0
      %1552 = vmatpush1.bf16.msra.mxu0 0
      %1553 = vmatprep.subr.bf16.mxu0 0
      %1554 = vmatpush1.bf16.msra.mxu0 0
      %1555 = vmatprep.subr.bf16.mxu0 0
      %1556 = vmatpush1.bf16.msra.mxu0 0
      %1557 = vmatprep.mubr.bf16.mxu0 0
      %1558 = vmatmul.mubr.bf16.gmra.mrb[0].mxu0 %v1514
      %v1559 = vpop.f32.mrb[0].mxu0
      %v1560 = vadd.f32 0.0, %v1559
      %v1561 = vpop.f32.mrb[0].mxu0
      %v1562 = vpop.f32.mrb[0].mxu0
      %v1563 = vadd.f32 0.0, %v1562
      %v1564 = vpop.f32.mrb[0].mxu0
      %1565 = vmatprep.mubr.bf16.mxu0 0
      %1566 = vmatmul.mubr.bf16.gmra.mrb[0].mxu0 %v1517
      %v1567 = vpop.f32.mrb[0].mxu0
      %v1568 = vadd.f32 0.0, %v1567
      %v1569 = vpop.f32.mrb[0].mxu0
      %v1570 = vpop.f32.mrb[0].mxu0
      %v1571 = vadd.f32 0.0, %v1570
      %v1572 = vpop.f32.mrb[0].mxu0
      %1573 = vmatprep.mubr.bf16.mxu0 0
      %1574 = vmatmul.mubr.bf16.gmra.mrb[0].mxu0 %v1520
      %v1575 = vpop.f32.mrb[0].mxu0
      %v1576 = vadd.f32 0.0, %v1575
      %v1577 = vpop.f32.mrb[0].mxu0
      %v1578 = vpop.f32.mrb[0].mxu0
      %v1579 = vadd.f32 0.0, %v1578
      %v1580 = vpop.f32.mrb[0].mxu0
      %1581 = vmatprep.mubr.bf16.mxu0 0
      %1582 = vmatmul.mubr.bf16.gmra.mrb[0].mxu0 %v1523
      %v1583 = vpop.f32.mrb[0].mxu0
      %v1584 = vadd.f32 0.0, %v1583
      %v1585 = vpop.f32.mrb[0].mxu0
      %v1586 = vpop.f32.mrb[0].mxu0
      %v1587 = vadd.f32 0.0, %v1586
      %v1588 = vpop.f32.mrb[0].mxu0
      %1589 = vdwg.mxu0
      %v1598 = vunpack.c.l.b16 %v1475
      %v1599 = vunpack.c.l.b16 %v1476
      %v1600 = vunpack.c.l.b16 %v1477
      %v1601 = vunpack.c.l.b16 %v1478
      %v1602 = vunpack.c.l.b16 %v1479
      %v1603 = vunpack.c.l.b16 %v1480
      %v1604 = vunpack.c.l.b16 %v1481
      %v1605 = vunpack.c.l.b16 %v1482
      %v1606 = vpack.c.b16 %v1599, %v1598
      %v1607 = vpack.c.b16 %v1601, %v1600
      %v1608 = vpack.c.b16 %v1603, %v1602
      %v1609 = vpack.c.b16 %v1605, %v1604
      %v1611 = vsel %vm574, %v1606, 0
      %v1614 = vsel %vm574, %v1607, 0
      %v1617 = vsel %vm574, %v1608, 0
      %v1620 = vsel %vm574, %v1609, 0
      %1622 = vmatprep.subr.bf16.mxu0 0
      %1623 = vmatpush1.bf16.msra.mxu0 %v570
      %1624 = vmatprep.subr.bf16.mxu0 0
      %1625 = vmatpush1.bf16.msra.mxu0 %v571
      %1626 = vmatprep.subr.bf16.mxu0 0
      %1627 = vmatpush1.bf16.msra.mxu0 0
      %1628 = vmatprep.subr.bf16.mxu0 0
      %1629 = vmatpush1.bf16.msra.mxu0 0
      %1630 = vmatprep.subr.bf16.mxu0 0
      %1631 = vmatpush1.bf16.msra.mxu0 0
      %1632 = vmatprep.subr.bf16.mxu0 0
      %1633 = vmatpush1.bf16.msra.mxu0 0
      %1634 = vmatprep.subr.bf16.mxu0 0
      %1635 = vmatpush1.bf16.msra.mxu0 0
      %1636 = vmatprep.subr.bf16.mxu0 0
      %1637 = vmatpush1.bf16.msra.mxu0 0
      %1638 = vmatprep.subr.bf16.mxu0 0
      %1639 = vmatpush1.bf16.msra.mxu0 0
      %1640 = vmatprep.subr.bf16.mxu0 0
      %1641 = vmatpush1.bf16.msra.mxu0 0
      %1642 = vmatprep.subr.bf16.mxu0 0
      %1643 = vmatpush1.bf16.msra.mxu0 0
      %1644 = vmatprep.subr.bf16.mxu0 0
      %1645 = vmatpush1.bf16.msra.mxu0 0
      %1646 = vmatprep.subr.bf16.mxu0 0
      %1647 = vmatpush1.bf16.msra.mxu0 0
      %1648 = vmatprep.subr.bf16.mxu0 0
      %1649 = vmatpush1.bf16.msra.mxu0 0
      %1650 = vmatprep.subr.bf16.mxu0 0
      %1651 = vmatpush1.bf16.msra.mxu0 0
      %1652 = vmatprep.subr.bf16.mxu0 0
      %1653 = vmatpush1.bf16.msra.mxu0 0
      %1654 = vmatprep.mubr.bf16.mxu0 0
      %1655 = vmatmul.mubr.bf16.gmra.mrb[0].mxu0 %v1611
      %v1656 = vpop.f32.mrb[0].mxu0
      %v1657 = vadd.f32 %v1560, %v1656
      %v1658 = vpop.f32.mrb[0].mxu0
      %v1659 = vpop.f32.mrb[0].mxu0
      %v1660 = vadd.f32 %v1563, %v1659
      %v1661 = vpop.f32.mrb[0].mxu0
      %1662 = vmatprep.mubr.bf16.mxu0 0
      %1663 = vmatmul.mubr.bf16.gmra.mrb[0].mxu0 %v1614
      %v1664 = vpop.f32.mrb[0].mxu0
      %v1665 = vadd.f32 %v1568, %v1664
      %v1666 = vpop.f32.mrb[0].mxu0
      %v1667 = vpop.f32.mrb[0].mxu0
      %v1668 = vadd.f32 %v1571, %v1667
      %v1669 = vpop.f32.mrb[0].mxu0
      %1670 = vmatprep.mubr.bf16.mxu0 0
      %1671 = vmatmul.mubr.bf16.gmra.mrb[0].mxu0 %v1617
      %v1672 = vpop.f32.mrb[0].mxu0
      %v1673 = vadd.f32 %v1576, %v1672
      %v1674 = vpop.f32.mrb[0].mxu0
      %v1675 = vpop.f32.mrb[0].mxu0
      %v1676 = vadd.f32 %v1579, %v1675
      %v1677 = vpop.f32.mrb[0].mxu0
      %1678 = vmatprep.mubr.bf16.mxu0 0
      %1679 = vmatmul.mubr.bf16.gmra.mrb[0].mxu0 %v1620
      %v1680 = vpop.f32.mrb[0].mxu0
      %v1681 = vadd.f32 %v1584, %v1680
      %v1682 = vpop.f32.mrb[0].mxu0
      %v1683 = vpop.f32.mrb[0].mxu0
      %v1684 = vadd.f32 %v1587, %v1683
      %v1685 = vpop.f32.mrb[0].mxu0
      %1686 = vdwg.mxu0
      %v1687 = vld [vmem:[%s12] sm:$0xff]
      %v1688 = vld [vmem:[%s12 + $0x8] sm:$0xff]
      %v1689 = vld [vmem:[%s12 + $0x10] sm:$0xff]
      %v1690 = vld [vmem:[%s12 + $0x18] sm:$0xff]
      %v1691 = vld [vmem:[%s12 + $0x20] sm:$0xff]
      %v1692 = vld [vmem:[%s12 + $0x28] sm:$0xff]
      %v1693 = vld [vmem:[%s12 + $0x30] sm:$0xff]
      %v1694 = vld [vmem:[%s12 + $0x38] sm:$0xff]
      %1696 = vset.pattern.permute.xlu0 0
      %1697 = vperm.xlu0 %1696, %v1687
      %v1698 = vpop.permute.xlu0 %1697
      %1701 = vset.pattern.permute.xlu0 0
      %1702 = vperm.xlu0 %1701, %v1688
      %v1703 = vpop.permute.xlu0 %1702
      %1706 = vset.pattern.permute.xlu0 0
      %1707 = vperm.xlu0 %1706, %v1689
      %v1708 = vpop.permute.xlu0 %1707
      %1711 = vset.pattern.permute.xlu0 0
      %1712 = vperm.xlu0 %1711, %v1690
      %v1713 = vpop.permute.xlu0 %1712
      %1716 = vset.pattern.permute.xlu0 0
      %1717 = vperm.xlu0 %1716, %v1691
      %v1718 = vpop.permute.xlu0 %1717
      %1721 = vset.pattern.permute.xlu0 0
      %1722 = vperm.xlu0 %1721, %v1692
      %v1723 = vpop.permute.xlu0 %1722
      %1726 = vset.pattern.permute.xlu0 0
      %1727 = vperm.xlu0 %1726, %v1693
      %v1728 = vpop.permute.xlu0 %1727
      %1731 = vset.pattern.permute.xlu0 0
      %1732 = vperm.xlu0 %1731, %v1694
      %v1733 = vpop.permute.xlu0 %1732
      %v1735 = vadd.f32 %v1657, %v1698
      %v1736 = vadd.f32 %v1660, %v1703
      %v1737 = vadd.f32 %v1665, %v1708
      %v1738 = vadd.f32 %v1668, %v1713
      %v1739 = vadd.f32 %v1673, %v1718
      %v1740 = vadd.f32 %v1676, %v1723
      %v1741 = vadd.f32 %v1681, %v1728
      %v1742 = vadd.f32 %v1684, %v1733
      %v1743 = vsel %vm966, %v1735, 0.0
      %1744 = vadd.xlane.f32.xlu0 %v1743
      %v1745 = vpop.xlane.xlu0 %1744
      %v1746 = vsel %vm966, %v1736, 0.0
      %1747 = vadd.xlane.f32.xlu0 %v1746
      %v1748 = vpop.xlane.xlu0 %1747
      %v1749 = vsel %vm966, %v1737, 0.0
      %1750 = vadd.xlane.f32.xlu0 %v1749
      %v1751 = vpop.xlane.xlu0 %1750
      %v1752 = vsel %vm966, %v1738, 0.0
      %1753 = vadd.xlane.f32.xlu0 %v1752
      %v1754 = vpop.xlane.xlu0 %1753
      %v1755 = vsel %vm966, %v1739, 0.0
      %1756 = vadd.xlane.f32.xlu0 %v1755
      %v1757 = vpop.xlane.xlu0 %1756
      %v1758 = vsel %vm966, %v1740, 0.0
      %1759 = vadd.xlane.f32.xlu0 %v1758
      %v1760 = vpop.xlane.xlu0 %1759
      %v1761 = vsel %vm966, %v1741, 0.0
      %1762 = vadd.xlane.f32.xlu0 %v1761
      %v1763 = vpop.xlane.xlu0 %1762
      %v1764 = vsel %vm966, %v1742, 0.0
      %1765 = vadd.xlane.f32.xlu0 %v1764
      %v1766 = vpop.xlane.xlu0 %1765
      %v1767 = vrcp.pop 16.0
      %v1768 = vmul.f32 %v1745, %v1767
      %v1769 = vmul.f32 %v1748, %v1767
      %v1770 = vmul.f32 %v1751, %v1767
      %v1771 = vmul.f32 %v1754, %v1767
      %v1772 = vmul.f32 %v1757, %v1767
      %v1773 = vmul.f32 %v1760, %v1767
      %v1774 = vmul.f32 %v1763, %v1767
      %v1775 = vmul.f32 %v1766, %v1767
      %v1776 = vmul.f32 %v1735, %v1735
      %v1777 = vmul.f32 %v1736, %v1736
      %v1778 = vmul.f32 %v1737, %v1737
      %v1779 = vmul.f32 %v1738, %v1738
      %v1780 = vmul.f32 %v1739, %v1739
      %v1781 = vmul.f32 %v1740, %v1740
      %v1782 = vmul.f32 %v1741, %v1741
      %v1783 = vmul.f32 %v1742, %v1742
      %v1784 = vsel %vm966, %v1776, 0.0
      %1785 = vadd.xlane.f32.xlu0 %v1784
      %v1786 = vpop.xlane.xlu0 %1785
      %v1787 = vsel %vm966, %v1777, 0.0
      %1788 = vadd.xlane.f32.xlu0 %v1787
      %v1789 = vpop.xlane.xlu0 %1788
      %v1790 = vsel %vm966, %v1778, 0.0
      %1791 = vadd.xlane.f32.xlu0 %v1790
      %v1792 = vpop.xlane.xlu0 %1791
      %v1793 = vsel %vm966, %v1779, 0.0
      %1794 = vadd.xlane.f32.xlu0 %v1793
      %v1795 = vpop.xlane.xlu0 %1794
      %v1796 = vsel %vm966, %v1780, 0.0
      %1797 = vadd.xlane.f32.xlu0 %v1796
      %v1798 = vpop.xlane.xlu0 %1797
      %v1799 = vsel %vm966, %v1781, 0.0
      %1800 = vadd.xlane.f32.xlu0 %v1799
      %v1801 = vpop.xlane.xlu0 %1800
      %v1802 = vsel %vm966, %v1782, 0.0
      %1803 = vadd.xlane.f32.xlu0 %v1802
      %v1804 = vpop.xlane.xlu0 %1803
      %v1805 = vsel %vm966, %v1783, 0.0
      %1806 = vadd.xlane.f32.xlu0 %v1805
      %v1807 = vpop.xlane.xlu0 %1806
      %v1808 = vmul.f32 %v1786, %v1767
      %v1809 = vmul.f32 %v1789, %v1767
      %v1810 = vmul.f32 %v1792, %v1767
      %v1811 = vmul.f32 %v1795, %v1767
      %v1812 = vmul.f32 %v1798, %v1767
      %v1813 = vmul.f32 %v1801, %v1767
      %v1814 = vmul.f32 %v1804, %v1767
      %v1815 = vmul.f32 %v1807, %v1767
      %v1816 = vmul.f32 %v1768, %v1768
      %v1817 = vmul.f32 %v1769, %v1769
      %v1818 = vmul.f32 %v1770, %v1770
      %v1819 = vmul.f32 %v1771, %v1771
      %v1820 = vmul.f32 %v1772, %v1772
      %v1821 = vmul.f32 %v1773, %v1773
      %v1822 = vmul.f32 %v1774, %v1774
      %v1823 = vmul.f32 %v1775, %v1775
      %v1824 = vsub.f32 %v1808, %v1816
      %v1825 = vsub.f32 %v1809, %v1817
      %v1826 = vsub.f32 %v1810, %v1818
      %v1827 = vsub.f32 %v1811, %v1819
      %v1828 = vsub.f32 %v1812, %v1820
      %v1829 = vsub.f32 %v1813, %v1821
      %v1830 = vsub.f32 %v1814, %v1822
      %v1831 = vsub.f32 %v1815, %v1823
      %v1832 = vmax.f32 %v1824, 0.0
      %v1833 = vmax.f32 %v1825, 0.0
      %v1834 = vmax.f32 %v1826, 0.0
      %v1835 = vmax.f32 %v1827, 0.0
      %v1836 = vmax.f32 %v1828, 0.0
      %v1837 = vmax.f32 %v1829, 0.0
      %v1838 = vmax.f32 %v1830, 0.0
      %v1839 = vmax.f32 %v1831, 0.0
      %v1840 = vsub.f32 %v1735, %v1768
      %v1841 = vsub.f32 %v1736, %v1769
      %v1842 = vsub.f32 %v1737, %v1770
      %v1843 = vsub.f32 %v1738, %v1771
      %v1844 = vsub.f32 %v1739, %v1772
      %v1845 = vsub.f32 %v1740, %v1773
      %v1846 = vsub.f32 %v1741, %v1774
      %v1847 = vsub.f32 %v1742, %v1775
      %v1848 = vadd.f32 %v1832, 1e-05
      %v1849 = vadd.f32 %v1833, 1e-05
      %v1850 = vadd.f32 %v1834, 1e-05
      %v1851 = vadd.f32 %v1835, 1e-05
      %v1852 = vadd.f32 %v1836, 1e-05
      %v1853 = vadd.f32 %v1837, 1e-05
      %v1854 = vadd.f32 %v1838, 1e-05
      %v1855 = vadd.f32 %v1839, 1e-05
      %v1856 = vrsqrt.pop %v1848
      %v1857 = vrsqrt.pop %v1849
      %v1858 = vrsqrt.pop %v1850
      %v1859 = vrsqrt.pop %v1851
      %v1860 = vrsqrt.pop %v1852
      %v1861 = vrsqrt.pop %v1853
      %v1862 = vrsqrt.pop %v1854
      %v1863 = vrsqrt.pop %v1855
      %v1864 = vmul.f32 %v1840, %v1856
      %v1865 = vmul.f32 %v1841, %v1857
      %v1866 = vmul.f32 %v1842, %v1858
      %v1867 = vmul.f32 %v1843, %v1859
      %v1868 = vmul.f32 %v1844, %v1860
      %v1869 = vmul.f32 %v1845, %v1861
      %v1870 = vmul.f32 %v1846, %v1862
      %v1871 = vmul.f32 %v1847, %v1863
      %v1872 = vmax.f32 %v1864, 0.0
      %v1873 = vmax.f32 %v1865, 0.0
      %v1874 = vmax.f32 %v1866, 0.0
      %v1875 = vmax.f32 %v1867, 0.0
      %v1876 = vmax.f32 %v1868, 0.0
      %v1877 = vmax.f32 %v1869, 0.0
      %v1878 = vmax.f32 %v1870, 0.0
      %v1879 = vmax.f32 %v1871, 0.0
      %v1880 = vld [vmem:[%s13] sm:$0xf]
      %v1881 = vld [vmem:[%s13 + $0x4] sm:$0xf]
      %v1882 = vld [vmem:[%s13 + $0x8] sm:$0xf]
      %v1883 = vld [vmem:[%s13 + $0xc] sm:$0xf]
      %v1884 = vpack.c.bf16 %v1873, %v1872
      %v1885 = vpack.c.bf16 %v1875, %v1874
      %v1886 = vpack.c.bf16 %v1877, %v1876
      %v1887 = vpack.c.bf16 %v1879, %v1878
      %v1888 = vld [vmem:[%s14] sm:$0xff]
      %v1889 = vld [vmem:[%s14 + $0x8] sm:$0xff]
      %v1890 = vld [vmem:[%s14 + $0x10] sm:$0xff]
      %v1891 = vld [vmem:[%s14 + $0x18] sm:$0xff]
      %1893 = vset.pattern.permute.xlu0 0
      %1894 = vperm.xlu0 %1893, %v1888
      %v1895 = vpop.permute.xlu0 %1894
      %1898 = vset.pattern.permute.xlu0 0
      %1899 = vperm.xlu0 %1898, %v1889
      %v1900 = vpop.permute.xlu0 %1899
      %1903 = vset.pattern.permute.xlu0 0
      %1904 = vperm.xlu0 %1903, %v1890
      %v1905 = vpop.permute.xlu0 %1904
      %1908 = vset.pattern.permute.xlu0 0
      %1909 = vperm.xlu0 %1908, %v1891
      %v1910 = vpop.permute.xlu0 %1909
      %v1916 = vunpack.c.l.b16 %v1880
      %v1917 = vunpack.c.l.b16 %v1881
      %v1918 = vunpack.c.l.b16 %v1882
      %v1919 = vunpack.c.l.b16 %v1883
      %v1920 = vpack.c.b16 %v1917, %v1916
      %v1921 = vpack.c.b16 %v1919, %v1918
      %vm1922 = vcmask 523264
      %v1924 = vsel %vm1922, %v1920, 0
      %v1927 = vsel %vm1922, %v1921, 0
      %1929 = vmatprep.subr.bf16.mxu0 0
      %1930 = vmatpush1.bf16.msra.mxu0 %v1884
      %1931 = vmatprep.subr.bf16.mxu0 0
      %1932 = vmatpush1.bf16.msra.mxu0 %v1885
      %1933 = vmatprep.subr.bf16.mxu0 0
      %1934 = vmatpush1.bf16.msra.mxu0 %v1886
      %1935 = vmatprep.subr.bf16.mxu0 0
      %1936 = vmatpush1.bf16.msra.mxu0 %v1887
      %1937 = vmatprep.subr.bf16.mxu0 0
      %1938 = vmatpush1.bf16.msra.mxu0 0
      %1939 = vmatprep.subr.bf16.mxu0 0
      %1940 = vmatpush1.bf16.msra.mxu0 0
      %1941 = vmatprep.subr.bf16.mxu0 0
      %1942 = vmatpush1.bf16.msra.mxu0 0
      %1943 = vmatprep.subr.bf16.mxu0 0
      %1944 = vmatpush1.bf16.msra.mxu0 0
      %1945 = vmatprep.subr.bf16.mxu0 0
      %1946 = vmatpush1.bf16.msra.mxu0 0
      %1947 = vmatprep.subr.bf16.mxu0 0
      %1948 = vmatpush1.bf16.msra.mxu0 0
      %1949 = vmatprep.subr.bf16.mxu0 0
      %1950 = vmatpush1.bf16.msra.mxu0 0
      %1951 = vmatprep.subr.bf16.mxu0 0
      %1952 = vmatpush1.bf16.msra.mxu0 0
      %1953 = vmatprep.subr.bf16.mxu0 0
      %1954 = vmatpush1.bf16.msra.mxu0 0
      %1955 = vmatprep.subr.bf16.mxu0 0
      %1956 = vmatpush1.bf16.msra.mxu0 0
      %1957 = vmatprep.subr.bf16.mxu0 0
      %1958 = vmatpush1.bf16.msra.mxu0 0
      %1959 = vmatprep.subr.bf16.mxu0 0
      %1960 = vmatpush1.bf16.msra.mxu0 0
      %1961 = vmatprep.mubr.bf16.mxu0 0
      %1962 = vmatmul.mubr.bf16.gmra.mrb[0].mxu0 %v1924
      %v1963 = vpop.f32.mrb[0].mxu0
      %v1964 = vadd.f32 %v1895, %v1963
      %v1965 = vpop.f32.mrb[0].mxu0
      %v1966 = vpop.f32.mrb[0].mxu0
      %v1967 = vadd.f32 %v1900, %v1966
      %v1968 = vpop.f32.mrb[0].mxu0
      %1969 = vmatprep.mubr.bf16.mxu0 0
      %1970 = vmatmul.mubr.bf16.gmra.mrb[0].mxu0 %v1927
      %v1971 = vpop.f32.mrb[0].mxu0
      %v1972 = vadd.f32 %v1905, %v1971
      %v1973 = vpop.f32.mrb[0].mxu0
      %v1974 = vpop.f32.mrb[0].mxu0
      %v1975 = vadd.f32 %v1910, %v1974
      %v1976 = vpop.f32.mrb[0].mxu0
      %1977 = vdwg.mxu0
      %1978 = vst.msk [vmem:[%s514] sm:$0xff] %vm966, %v1964
      %1979 = vst.msk [vmem:[%s514 + $0x8] sm:$0xff] %vm966, %v1967
      %1980 = vst.msk [vmem:[%s514 + $0x10] sm:$0xff] %vm966, %v1972
      %1981 = vst.msk [vmem:[%s514 + $0x18] sm:$0xff] %vm966, %v1975
      %p1982 = scmp.lt.s32.totalorder %s26, 1
      %s1983 = scalar_select %p1982, %s26, 1
      %s1984 = smul.addr %s1983, 4
      %s1985 = smul.addr %s1984, 8
      %s1986 = scalar_lea.vmem %s15, %s1985
      // Predicated region
      $region81: #{tpu_custom_call.1} parent=79 // pred_check
        %p1987 = pneg %p369
      $region82: #{tpu_custom_call.1} parent=79 // pred_check_branch
        %1989 = sbr.rel (%p1987) target = $region84
      $region83: #{tpu_custom_call.1} parent=79 // pred_region
        _
      $region84: #{tpu_custom_call.1} parent=79 // pred_fallthru
        _
    $region80: #{tpu_custom_call.1} parent=5 // pred_fallthru
      _
    %p1990 = scmp.le.s32.totalorder 2, %s21
    // Predicated region
    $region85: #{tpu_custom_call.1} parent=5 // pred_check
      %p1991 = pneg %p1990
    $region86: #{tpu_custom_call.1} parent=5 // pred_check_branch
      %1993 = sbr.rel (%p1991) target = $region88
    $region87: #{tpu_custom_call.1} parent=5 // pred_region
      %s1994 = ssub.s32 %s21, 2
      // Predicated region
      $region89: #{tpu_custom_call.1} parent=87 // pred_check
        %p1995 = pneg %p375
      $region90: #{tpu_custom_call.1} parent=87 // pred_check_branch
        %1997 = sbr.rel (%p1995) target = $region92
      $region91: #{tpu_custom_call.1} parent=87 // pred_region
        %p1998 = scmp.lt.s32.totalorder %s27, 1
        %s1999 = scalar_select %p1998, %s27, 1
        %s2000 = smul.addr %s1999, 4
        %s2001 = smul.addr %s2000, 8
        %s2002 = scalar_lea.vmem %s15, %s2001
      $region92: #{tpu_custom_call.1} parent=87 // pred_fallthru
        _
    $region88: #{tpu_custom_call.1} parent=5 // pred_fallthru
      _
  $region6: #{tpu_custom_call.1} parent=0 // loop_footer
    %s25 = sadd.s32 1, %s21
  $region7: #{tpu_custom_call.1} parent=0 // loop_footer_branch
    %20 = sbr.rel target = $region3
  $region8: #{tpu_custom_call.1} parent=0 // loop_exit
    _

</llo_original>
